<compile_context>
chip_gen: v5e
topology: v5e:2x2
jax: 0.10.0
libtpu: 0.0.40
codegen_flags: <defaults>
</compile_context>

<pallas_src>
import functools

import jax
import jax.numpy as jnp
import numpy as np
from jax.experimental import pallas as pl
from jax.experimental.pallas import tpu as pltpu


def sblock_kernel(x_ref, bias_ref,
                  wqkv_ref, bqkv_ref,
                  wo_ref, bo_ref,
                  g1_ref, be1_ref,
                  wi_ref, bi_ref, wf_ref, bf_ref,
                  g2_ref, be2_ref,
                  o_ref, *, num_heads, qkv_dim, seq_len, batch_block, matmul_dtype):
    Bb, S = batch_block, seq_len
    M = Bb * S
    head_dim = qkv_dim // num_heads

    def mm(a, b):  # MXU matmul, f32 accumulation; operands optionally bf16
        return jnp.dot(a.astype(matmul_dtype), b.astype(matmul_dtype),
                       preferred_element_type=jnp.float32)

    x = x_ref[...]                 # (M, H) f32 (batch folded into rows)
    bias = bias_ref[...]           # (Bb, S, S) additive softmax bias, f32

    # ---- fused Q/K/V projection over all folded rows ----
    qkv = mm(x, wqkv_ref[...]) + bqkv_ref[...]
    scale = 1.0 / jnp.sqrt(jnp.float32(qkv_dim))
    # leading-dim split (M, .) -> (Bb, S, .): no lane/sublane relayout
    q = (qkv[:, 0 * qkv_dim:1 * qkv_dim] * scale).reshape(Bb, S, qkv_dim)
    k = qkv[:, 1 * qkv_dim:2 * qkv_dim].reshape(Bb, S, qkv_dim)
    v = qkv[:, 2 * qkv_dim:3 * qkv_dim].reshape(Bb, S, qkv_dim)

    # ---- Bb-batched per-head attention; scores stay (Bb, S, S) ----
    ctx_heads = []
    for h in range(num_heads):
        lo = h * head_dim
        hi = lo + head_dim
        qh = q[:, :, lo:hi].astype(matmul_dtype)
        kh = k[:, :, lo:hi].astype(matmul_dtype)
        vh = v[:, :, lo:hi].astype(matmul_dtype)
        s = jnp.einsum('bqd,bkd->bqk', qh, kh,
                       preferred_element_type=jnp.float32) + bias
        s = s - jnp.max(s, axis=-1, keepdims=True)
        p = jnp.exp(s)                                               # f32 softmax
        p = p * pl.reciprocal(jnp.sum(p, axis=-1, keepdims=True), approx=True)
        ch = jnp.einsum('bqk,bkd->bqd', p.astype(matmul_dtype), vh,
                        preferred_element_type=jnp.float32)
        ctx_heads.append(ch.reshape(M, head_dim))
    ctx = jnp.concatenate(ctx_heads, axis=-1)                        # (M, qkv)

    attn = mm(ctx, wo_ref[...]) + bo_ref[...]

    def layernorm(z, g, b):
        mu = jnp.mean(z, axis=-1, keepdims=True)
        d = z - mu
        var = jnp.mean(d * d, axis=-1, keepdims=True)
        return d * jax.lax.rsqrt(var + 1e-6) * g + b

    # ---- residual + layernorm (attention) ----
    x1 = layernorm(x + attn, g1_ref[...], be1_ref[...])

    # ---- MLP: linear -> exact GELU (erf) -> linear ----
    y = mm(x1, wi_ref[...]) + bi_ref[...]
    y = 0.5 * y * (1.0 + jax.lax.erf(y * (1.0 / jnp.sqrt(jnp.float32(2.0)))))
    y = mm(y, wf_ref[...]) + bf_ref[...]

    # ---- SBlock final residual includes the ORIGINAL input: LN(y + x1 + x) ----
    out = layernorm(y + x1 + x, g2_ref[...], be2_ref[...])
    # TODO(synk): experiment with a lane-dense (M/4, 128) output repack; the in-kernel
    # sublane->lane relayout may outweigh the masked-store savings at H=32.
    o_ref[...] = out.astype(o_ref.dtype)


def _pick_batch_block(B, S, cap_rows=512):
    """Largest Bb dividing B with Bb*S <= cap_rows (never falls back to Bb=1 unless
    forced). Prefer >=2 grid steps when each step still keeps >=128 rows so the
    parallel grid axis can feed both v7x TensorCores."""
    best = 1
    for bb in range(1, B + 1):
        if B % bb == 0 and bb * S <= cap_rows:
            best = bb
    if best == B and B % 2 == 0 and (B // 2) * S >= 128:
        best = B // 2
    return best


def sblock_forward(x, mask, params, *, num_heads, batch_block=None,
                   matmul_dtype=jnp.float32):
    B, S, H = x.shape
    qkv_dim = params["wq"].shape[1]
    mlp_dim = params["wi"].shape[1]

    if batch_block is None:
        batch_block = _pick_batch_block(B, S)
    assert B % batch_block == 0, "batch_block must divide B"
    Bb = batch_block
    M = Bb * S
    steps = B // Bb

    # Fold (B, S) into a single row dimension (free XLA reshape).
    x2 = x.reshape(B * S, H)

    # Additive softmax bias precomputed ONCE in the wrapper (hoisted out of the
    # kernel body): (1 - m m^T) * -1e6 per batch element, shape (B, S, S).
    m = mask.reshape(B, S, 1).astype(jnp.float32)
    bias = (1.0 - m * jnp.swapaxes(m, -1, -2)) * jnp.float32(-1000000.0)

    # Fused QKV weight/bias packing -> single (H, 3*qkv) matmul in the kernel.
    wqkv = jnp.concatenate([params["wq"], params["wk"], params["wv"]], axis=1)
    bqkv = jnp.concatenate([params["bq"], params["bk"], params["bv"]], axis=1)

    kernel = functools.partial(sblock_kernel, num_heads=num_heads, qkv_dim=qkv_dim,
                               seq_len=S, batch_block=Bb, matmul_dtype=matmul_dtype)

    def rows(shape):      # row-blocked per grid step along the leading axis
        return pl.BlockSpec(shape, lambda i, _n=len(shape): (i,) + (0,) * (_n - 1))

    def full(shape):      # weights/biases: same (whole-array) block every step
        # TODO(synk): pipeline_mode=pl.Buffered(1) would single-buffer these
        # constant-index blocks; kept at default until verified warning-free.
        return pl.BlockSpec(shape, lambda i, _n=len(shape): (0,) * _n)

    in_specs = [
        rows((M, H)),                                    # x rows
        rows((Bb, S, S)),                                # precomputed softmax bias
        full((H, 3 * qkv_dim)), full((1, 3 * qkv_dim)),  # fused q/k/v proj
        full((qkv_dim, H)), full((1, H)),                # attention output proj
        full((1, H)), full((1, H)),                      # layernorm_att gamma/beta
        full((H, mlp_dim)), full((1, mlp_dim)),          # linear_inter
        full((mlp_dim, H)), full((1, H)),                # linear_final
        full((1, H)), full((1, H)),                      # layernorm_final gamma/beta
    ]
    out_spec = rows((M, H))

    hd = qkv_dim // num_heads
    flops = steps * (2 * M * H * 3 * qkv_dim                        # fused qkv proj
                     + num_heads * 4 * Bb * S * S * hd              # scores + context
                     + 2 * M * qkv_dim * H                          # output projection
                     + 2 * M * H * mlp_dim + 2 * M * mlp_dim * H)   # MLP
    transcendentals = steps * (num_heads * Bb * S * S + M * mlp_dim + 4 * M)
    bytes_accessed = 4 * (x2.size + bias.size + B * S * H + int(wqkv.size)
                          + int(bqkv.size) + sum(int(v.size) for v in params.values()))

    out2 = pl.pallas_call(
        kernel,
        grid=(steps,),
        in_specs=in_specs,
        out_specs=out_spec,
        out_shape=jax.ShapeDtypeStruct((B * S, H), jnp.float32),
        compiler_params=pltpu.CompilerParams(
            dimension_semantics=("parallel",),
            vmem_limit_bytes=32 * 1024 * 1024),
        cost_estimate=pl.CostEstimate(flops=int(flops),
                                      transcendentals=int(transcendentals),
                                      bytes_accessed=int(bytes_accessed)),
    )(
        x2, bias,
        wqkv, bqkv,
        params["wo"], params["bo"],
        params["g1"], params["be1"],
        params["wi"], params["bi"], params["wf"], params["bf"],
        params["g2"], params["be2"],
    )
    return out2.reshape(B, S, H)


def sblock_reference(x, mask, params, *, num_heads):
    """Plain-JAX reference mirroring the PyTorch SBlock forward (eval mode)."""
    B, S, H = x.shape
    qkv_dim = params["wq"].shape[1]
    head_dim = qkv_dim // num_heads

    q = x @ params["wq"] + params["bq"][0]
    k = x @ params["wk"] + params["bk"][0]
    v = x @ params["wv"] + params["bv"][0]

    def split(t):  # (B,S,qkv) -> (B,nh,S,hd)
        return t.reshape(B, S, num_heads, head_dim).transpose(0, 2, 1, 3)

    q, k, v = split(q), split(k), split(v)
    q = q * (1.0 / jnp.sqrt(jnp.float32(qkv_dim)))
    qk = jnp.einsum("bhqd,bhkd->bhqk", q, k)
    sm = mask * jnp.swapaxes(mask, -1, -2)                 # (B,S,S)
    qk = qk + ((1.0 - sm) * (-1000000.0))[:, None]
    qk = jax.nn.softmax(qk, axis=-1)
    out = jnp.einsum("bhqk,bhkd->bhqd", qk, v)
    out = out.transpose(0, 2, 1, 3).reshape(B, S, qkv_dim)
    attn = out @ params["wo"] + params["bo"][0]

    def ln(z, g, b):
        mu = jnp.mean(z, axis=-1, keepdims=True)
        var = jnp.mean((z - mu) ** 2, axis=-1, keepdims=True)
        return (z - mu) * jax.lax.rsqrt(var + 1e-6) * g[0] + b[0]

    x1 = ln(x + attn, params["g1"], params["be1"])
    y = x1 @ params["wi"] + params["bi"][0]
    y = jax.nn.gelu(y, approximate=False)
    y = y @ params["wf"] + params["bf"][0]
    # SBlock: layernorm_final(y + x + input)
    return ln(y + x1 + x, params["g2"], params["be2"])


if __name__ == "__main__":
    # Small shapes consistent with the module
    B, S = 2, 8
    hidden_dim = 32
    qkv_dim = 32
    mlp_dim = 64
    num_heads = 4
    norm_dim = hidden_dim

    key = jax.random.PRNGKey(0)
    ks = jax.random.split(key, 12)

    def w(k, shape, scale=0.05):
        return (scale * jax.random.normal(k, shape)).astype(jnp.float32)

    params = {
        # linear weights stored as (in, out); biases as (1, out)
        "wq": w(ks[0], (hidden_dim, qkv_dim)), "bq": w(ks[1], (1, qkv_dim)),
        "wk": w(ks[2], (hidden_dim, qkv_dim)), "bk": w(ks[3], (1, qkv_dim)),
        "wv": w(ks[4], (hidden_dim, qkv_dim)), "bv": w(ks[5], (1, qkv_dim)),
        "wo": w(ks[6], (qkv_dim, hidden_dim)), "bo": w(ks[7], (1, hidden_dim)),
        "g1": jnp.ones((1, norm_dim), jnp.float32), "be1": jnp.zeros((1, norm_dim), jnp.float32),
        "wi": w(ks[8], (hidden_dim, mlp_dim)), "bi": w(ks[9], (1, mlp_dim)),
        "wf": w(ks[10], (mlp_dim, hidden_dim)), "bf": w(ks[11], (1, hidden_dim)),
        "g2": jnp.ones((1, norm_dim), jnp.float32), "be2": jnp.zeros((1, norm_dim), jnp.float32),
    }

    xkey, mkey = jax.random.split(jax.random.PRNGKey(42))
    x = jax.random.normal(xkey, (B, S, hidden_dim), jnp.float32)
    # mask: [B, S, 1] of 0/1 (last two positions of batch 1 masked out)
    mask = jnp.ones((B, S, 1), jnp.float32)
    mask = mask.at[1, -2:, 0].set(0.0)

    out = sblock_forward(x, mask, params, num_heads=num_heads)
    out = jax.block_until_ready(out)

    ref = sblock_reference(x, mask, params, num_heads=num_heads)
    # Tolerance slightly loosened vs. pure f32 because the softmax denominator uses
    # the EUP approximate reciprocal (pl.reciprocal(..., approx=True)).
    np.testing.assert_allclose(np.asarray(out), np.asarray(ref), rtol=1e-3, atol=1e-3)

    print("KERNEL_OK")
</pallas_src>

<mosaic_0001>
module attributes {stable_mosaic.version = 11 : i64} {
  func.func @sblock_kernel(%arg0: i32, %arg1: memref<16x32xf32, #tpu.memory_space<vmem>>, %arg2: memref<2x8x8xf32, #tpu.memory_space<vmem>>, %arg3: memref<32x96xf32, #tpu.memory_space<vmem>>, %arg4: memref<1x96xf32, #tpu.memory_space<vmem>>, %arg5: memref<32x32xf32, #tpu.memory_space<vmem>>, %arg6: memref<1x32xf32, #tpu.memory_space<vmem>>, %arg7: memref<1x32xf32, #tpu.memory_space<vmem>>, %arg8: memref<1x32xf32, #tpu.memory_space<vmem>>, %arg9: memref<32x64xf32, #tpu.memory_space<vmem>>, %arg10: memref<1x64xf32, #tpu.memory_space<vmem>>, %arg11: memref<64x32xf32, #tpu.memory_space<vmem>>, %arg12: memref<1x32xf32, #tpu.memory_space<vmem>>, %arg13: memref<1x32xf32, #tpu.memory_space<vmem>>, %arg14: memref<1x32xf32, #tpu.memory_space<vmem>>, %arg15: memref<16x32xf32, #tpu.memory_space<vmem>>) attributes {dimension_semantics = [#tpu.dimension_semantics<parallel>], iteration_bounds = array<i64: 1>, scalar_prefetch = 0 : i64, scratch_operands = 0 : i64, tpu.core_type = #tpu.core_type<tc>, window_params = [{transform_indices = @transform_0, window_bounds = array<i64: 16, 32>}, {transform_indices = @transform_1, window_bounds = array<i64: 2, 8, 8>}, {pipeline_mode = #tpu.pipeline_mode<synchronous>, transform_indices = @transform_2, window_bounds = array<i64: 32, 96>}, {pipeline_mode = #tpu.pipeline_mode<synchronous>, transform_indices = @transform_3, window_bounds = array<i64: 1, 96>}, {pipeline_mode = #tpu.pipeline_mode<synchronous>, transform_indices = @transform_4, window_bounds = array<i64: 32, 32>}, {pipeline_mode = #tpu.pipeline_mode<synchronous>, transform_indices = @transform_5, window_bounds = array<i64: 1, 32>}, {pipeline_mode = #tpu.pipeline_mode<synchronous>, transform_indices = @transform_6, window_bounds = array<i64: 1, 32>}, {pipeline_mode = #tpu.pipeline_mode<synchronous>, transform_indices = @transform_7, window_bounds = array<i64: 1, 32>}, {pipeline_mode = #tpu.pipeline_mode<synchronous>, transform_indices = @transform_8, window_bounds = array<i64: 32, 64>}, {pipeline_mode = #tpu.pipeline_mode<synchronous>, transform_indices = @transform_9, window_bounds = array<i64: 1, 64>}, {pipeline_mode = #tpu.pipeline_mode<synchronous>, transform_indices = @transform_10, window_bounds = array<i64: 64, 32>}, {pipeline_mode = #tpu.pipeline_mode<synchronous>, transform_indices = @transform_11, window_bounds = array<i64: 1, 32>}, {pipeline_mode = #tpu.pipeline_mode<synchronous>, transform_indices = @transform_12, window_bounds = array<i64: 1, 32>}, {pipeline_mode = #tpu.pipeline_mode<synchronous>, transform_indices = @transform_13, window_bounds = array<i64: 1, 32>}, {transform_indices = @transform_14, window_bounds = array<i64: 16, 32>}]} {
    %c0 = arith.constant 0 : index
    %c0_0 = arith.constant 0 : index
    %0 = vector.load %arg1[%c0, %c0_0] : memref<16x32xf32, #tpu.memory_space<vmem>>, vector<16x32xf32>
    %c0_1 = arith.constant 0 : index
    %c0_2 = arith.constant 0 : index
    %c0_3 = arith.constant 0 : index
    %1 = vector.load %arg2[%c0_1, %c0_2, %c0_3] : memref<2x8x8xf32, #tpu.memory_space<vmem>>, vector<2x8x8xf32>
    %c0_4 = arith.constant 0 : index
    %c0_5 = arith.constant 0 : index
    %2 = vector.load %arg3[%c0_4, %c0_5] : memref<32x96xf32, #tpu.memory_space<vmem>>, vector<32x96xf32>
    %cst = arith.constant dense<0.000000e+00> : vector<16x96xf32>
    %3 = tpu.matmul %0, %2, %cst {dimension_numbers = #tpu.dot_dimension_numbers<[1], [0], [0], [1], [0, 0, 1, 1], [], []>} : vector<16x32xf32>, vector<32x96xf32>, vector<16x96xf32> -> vector<16x96xf32>
    %c0_6 = arith.constant 0 : index
    %c0_7 = arith.constant 0 : index
    %4 = vector.load %arg4[%c0_6, %c0_7] : memref<1x96xf32, #tpu.memory_space<vmem>>, vector<1x96xf32>
    %5 = vector.broadcast %4 : vector<1x96xf32> to vector<16x96xf32>
    %6 = arith.addf %3, %5 : vector<16x96xf32>
    %cst_8 = arith.constant 3.200000e+01 : f32
    %7 = math.sqrt %cst_8 : f32
    %cst_9 = arith.constant 1.000000e+00 : f32
    %8 = arith.divf %cst_9, %7 : f32
    %9 = vector.extract_strided_slice %6 {offsets = [0, 0], sizes = [16, 32], strides = [1, 1]} : vector<16x96xf32> to vector<16x32xf32>
    %10 = vector.broadcast %8 : f32 to vector<16x32xf32>
    %11 = arith.mulf %9, %10 : vector<16x32xf32>
    %12 = vector.shape_cast %11 : vector<16x32xf32> to vector<2x8x32xf32>
    %13 = vector.extract_strided_slice %6 {offsets = [0, 32], sizes = [16, 32], strides = [1, 1]} : vector<16x96xf32> to vector<16x32xf32>
    %14 = vector.shape_cast %13 : vector<16x32xf32> to vector<2x8x32xf32>
    %15 = vector.extract_strided_slice %6 {offsets = [0, 64], sizes = [16, 32], strides = [1, 1]} : vector<16x96xf32> to vector<16x32xf32>
    %16 = vector.shape_cast %15 : vector<16x32xf32> to vector<2x8x32xf32>
    %17 = vector.extract_strided_slice %12 {offsets = [0, 0, 0], sizes = [2, 8, 8], strides = [1, 1, 1]} : vector<2x8x32xf32> to vector<2x8x8xf32>
    %18 = vector.extract_strided_slice %14 {offsets = [0, 0, 0], sizes = [2, 8, 8], strides = [1, 1, 1]} : vector<2x8x32xf32> to vector<2x8x8xf32>
    %19 = vector.extract_strided_slice %16 {offsets = [0, 0, 0], sizes = [2, 8, 8], strides = [1, 1, 1]} : vector<2x8x32xf32> to vector<2x8x8xf32>
    "tpu.trace_start"() <{level = 10 : i32, message = "bqd,bkd->bqk"}> : () -> ()
    %cst_10 = arith.constant dense<0.000000e+00> : vector<2x8x8xf32>
    %20 = tpu.matmul %17, %18, %cst_10 {dimension_numbers = #tpu.dot_dimension_numbers<[2], [2], [1], [1], [0, 0, 0, 1, 1, 1], [0], [0]>} : vector<2x8x8xf32>, vector<2x8x8xf32>, vector<2x8x8xf32> -> vector<2x8x8xf32>
    "tpu.trace_stop"() : () -> ()
    %21 = arith.addf %20, %1 : vector<2x8x8xf32>
    %cst_11 = arith.constant dense<0xFF800000> : vector<2x8xf32>
    %22 = vector.multi_reduction <maximumf>, %21, %cst_11 [2] : vector<2x8x8xf32> to vector<2x8xf32>
    %23 = vector.shape_cast %22 : vector<2x8xf32> to vector<2x8x1xf32>
    %24 = vector.broadcast %23 : vector<2x8x1xf32> to vector<2x8x8xf32>
    %25 = arith.subf %21, %24 : vector<2x8x8xf32>
    %26 = math.exp %25 : vector<2x8x8xf32>
    %cst_12 = arith.constant dense<0.000000e+00> : vector<2x8xf32>
    %27 = vector.multi_reduction <add>, %26, %cst_12 [2] : vector<2x8x8xf32> to vector<2x8xf32>
    %28 = vector.shape_cast %27 : vector<2x8xf32> to vector<2x8x1xf32>
    %29 = tpu.reciprocal %28 {approx = true} : vector<2x8x1xf32> -> vector<2x8x1xf32>
    %30 = vector.broadcast %29 : vector<2x8x1xf32> to vector<2x8x8xf32>
    %31 = arith.mulf %26, %30 : vector<2x8x8xf32>
    "tpu.trace_start"() <{level = 10 : i32, message = "bqk,bkd->bqd"}> : () -> ()
    %cst_13 = arith.constant dense<0.000000e+00> : vector<2x8x8xf32>
    %32 = tpu.matmul %31, %19, %cst_13 {dimension_numbers = #tpu.dot_dimension_numbers<[2], [1], [1], [2], [0, 0, 0, 1, 1, 2], [0], [0]>} : vector<2x8x8xf32>, vector<2x8x8xf32>, vector<2x8x8xf32> -> vector<2x8x8xf32>
    "tpu.trace_stop"() : () -> ()
    %33 = vector.shape_cast %32 : vector<2x8x8xf32> to vector<16x8xf32>
    %34 = vector.extract_strided_slice %12 {offsets = [0, 0, 8], sizes = [2, 8, 8], strides = [1, 1, 1]} : vector<2x8x32xf32> to vector<2x8x8xf32>
    %35 = vector.extract_strided_slice %14 {offsets = [0, 0, 8], sizes = [2, 8, 8], strides = [1, 1, 1]} : vector<2x8x32xf32> to vector<2x8x8xf32>
    %36 = vector.extract_strided_slice %16 {offsets = [0, 0, 8], sizes = [2, 8, 8], strides = [1, 1, 1]} : vector<2x8x32xf32> to vector<2x8x8xf32>
    "tpu.trace_start"() <{level = 10 : i32, message = "bqd,bkd->bqk"}> : () -> ()
    %cst_14 = arith.constant dense<0.000000e+00> : vector<2x8x8xf32>
    %37 = tpu.matmul %34, %35, %cst_14 {dimension_numbers = #tpu.dot_dimension_numbers<[2], [2], [1], [1], [0, 0, 0, 1, 1, 1], [0], [0]>} : vector<2x8x8xf32>, vector<2x8x8xf32>, vector<2x8x8xf32> -> vector<2x8x8xf32>
    "tpu.trace_stop"() : () -> ()
    %38 = arith.addf %37, %1 : vector<2x8x8xf32>
    %cst_15 = arith.constant dense<0xFF800000> : vector<2x8xf32>
    %39 = vector.multi_reduction <maximumf>, %38, %cst_15 [2] : vector<2x8x8xf32> to vector<2x8xf32>
    %40 = vector.shape_cast %39 : vector<2x8xf32> to vector<2x8x1xf32>
    %41 = vector.broadcast %40 : vector<2x8x1xf32> to vector<2x8x8xf32>
    %42 = arith.subf %38, %41 : vector<2x8x8xf32>
    %43 = math.exp %42 : vector<2x8x8xf32>
    %cst_16 = arith.constant dense<0.000000e+00> : vector<2x8xf32>
    %44 = vector.multi_reduction <add>, %43, %cst_16 [2] : vector<2x8x8xf32> to vector<2x8xf32>
    %45 = vector.shape_cast %44 : vector<2x8xf32> to vector<2x8x1xf32>
    %46 = tpu.reciprocal %45 {approx = true} : vector<2x8x1xf32> -> vector<2x8x1xf32>
    %47 = vector.broadcast %46 : vector<2x8x1xf32> to vector<2x8x8xf32>
    %48 = arith.mulf %43, %47 : vector<2x8x8xf32>
    "tpu.trace_start"() <{level = 10 : i32, message = "bqk,bkd->bqd"}> : () -> ()
    %cst_17 = arith.constant dense<0.000000e+00> : vector<2x8x8xf32>
    %49 = tpu.matmul %48, %36, %cst_17 {dimension_numbers = #tpu.dot_dimension_numbers<[2], [1], [1], [2], [0, 0, 0, 1, 1, 2], [0], [0]>} : vector<2x8x8xf32>, vector<2x8x8xf32>, vector<2x8x8xf32> -> vector<2x8x8xf32>
    "tpu.trace_stop"() : () -> ()
    %50 = vector.shape_cast %49 : vector<2x8x8xf32> to vector<16x8xf32>
    %51 = vector.extract_strided_slice %12 {offsets = [0, 0, 16], sizes = [2, 8, 8], strides = [1, 1, 1]} : vector<2x8x32xf32> to vector<2x8x8xf32>
    %52 = vector.extract_strided_slice %14 {offsets = [0, 0, 16], sizes = [2, 8, 8], strides = [1, 1, 1]} : vector<2x8x32xf32> to vector<2x8x8xf32>
    %53 = vector.extract_strided_slice %16 {offsets = [0, 0, 16], sizes = [2, 8, 8], strides = [1, 1, 1]} : vector<2x8x32xf32> to vector<2x8x8xf32>
    "tpu.trace_start"() <{level = 10 : i32, message = "bqd,bkd->bqk"}> : () -> ()
    %cst_18 = arith.constant dense<0.000000e+00> : vector<2x8x8xf32>
    %54 = tpu.matmul %51, %52, %cst_18 {dimension_numbers = #tpu.dot_dimension_numbers<[2], [2], [1], [1], [0, 0, 0, 1, 1, 1], [0], [0]>} : vector<2x8x8xf32>, vector<2x8x8xf32>, vector<2x8x8xf32> -> vector<2x8x8xf32>
    "tpu.trace_stop"() : () -> ()
    %55 = arith.addf %54, %1 : vector<2x8x8xf32>
    %cst_19 = arith.constant dense<0xFF800000> : vector<2x8xf32>
    %56 = vector.multi_reduction <maximumf>, %55, %cst_19 [2] : vector<2x8x8xf32> to vector<2x8xf32>
    %57 = vector.shape_cast %56 : vector<2x8xf32> to vector<2x8x1xf32>
    %58 = vector.broadcast %57 : vector<2x8x1xf32> to vector<2x8x8xf32>
    %59 = arith.subf %55, %58 : vector<2x8x8xf32>
    %60 = math.exp %59 : vector<2x8x8xf32>
    %cst_20 = arith.constant dense<0.000000e+00> : vector<2x8xf32>
    %61 = vector.multi_reduction <add>, %60, %cst_20 [2] : vector<2x8x8xf32> to vector<2x8xf32>
    %62 = vector.shape_cast %61 : vector<2x8xf32> to vector<2x8x1xf32>
    %63 = tpu.reciprocal %62 {approx = true} : vector<2x8x1xf32> -> vector<2x8x1xf32>
    %64 = vector.broadcast %63 : vector<2x8x1xf32> to vector<2x8x8xf32>
    %65 = arith.mulf %60, %64 : vector<2x8x8xf32>
    "tpu.trace_start"() <{level = 10 : i32, message = "bqk,bkd->bqd"}> : () -> ()
    %cst_21 = arith.constant dense<0.000000e+00> : vector<2x8x8xf32>
    %66 = tpu.matmul %65, %53, %cst_21 {dimension_numbers = #tpu.dot_dimension_numbers<[2], [1], [1], [2], [0, 0, 0, 1, 1, 2], [0], [0]>} : vector<2x8x8xf32>, vector<2x8x8xf32>, vector<2x8x8xf32> -> vector<2x8x8xf32>
    "tpu.trace_stop"() : () -> ()
    %67 = vector.shape_cast %66 : vector<2x8x8xf32> to vector<16x8xf32>
    %68 = vector.extract_strided_slice %12 {offsets = [0, 0, 24], sizes = [2, 8, 8], strides = [1, 1, 1]} : vector<2x8x32xf32> to vector<2x8x8xf32>
    %69 = vector.extract_strided_slice %14 {offsets = [0, 0, 24], sizes = [2, 8, 8], strides = [1, 1, 1]} : vector<2x8x32xf32> to vector<2x8x8xf32>
    %70 = vector.extract_strided_slice %16 {offsets = [0, 0, 24], sizes = [2, 8, 8], strides = [1, 1, 1]} : vector<2x8x32xf32> to vector<2x8x8xf32>
    "tpu.trace_start"() <{level = 10 : i32, message = "bqd,bkd->bqk"}> : () -> ()
    %cst_22 = arith.constant dense<0.000000e+00> : vector<2x8x8xf32>
    %71 = tpu.matmul %68, %69, %cst_22 {dimension_numbers = #tpu.dot_dimension_numbers<[2], [2], [1], [1], [0, 0, 0, 1, 1, 1], [0], [0]>} : vector<2x8x8xf32>, vector<2x8x8xf32>, vector<2x8x8xf32> -> vector<2x8x8xf32>
    "tpu.trace_stop"() : () -> ()
    %72 = arith.addf %71, %1 : vector<2x8x8xf32>
    %cst_23 = arith.constant dense<0xFF800000> : vector<2x8xf32>
    %73 = vector.multi_reduction <maximumf>, %72, %cst_23 [2] : vector<2x8x8xf32> to vector<2x8xf32>
    %74 = vector.shape_cast %73 : vector<2x8xf32> to vector<2x8x1xf32>
    %75 = vector.broadcast %74 : vector<2x8x1xf32> to vector<2x8x8xf32>
    %76 = arith.subf %72, %75 : vector<2x8x8xf32>
    %77 = math.exp %76 : vector<2x8x8xf32>
    %cst_24 = arith.constant dense<0.000000e+00> : vector<2x8xf32>
    %78 = vector.multi_reduction <add>, %77, %cst_24 [2] : vector<2x8x8xf32> to vector<2x8xf32>
    %79 = vector.shape_cast %78 : vector<2x8xf32> to vector<2x8x1xf32>
    %80 = tpu.reciprocal %79 {approx = true} : vector<2x8x1xf32> -> vector<2x8x1xf32>
    %81 = vector.broadcast %80 : vector<2x8x1xf32> to vector<2x8x8xf32>
    %82 = arith.mulf %77, %81 : vector<2x8x8xf32>
    "tpu.trace_start"() <{level = 10 : i32, message = "bqk,bkd->bqd"}> : () -> ()
    %cst_25 = arith.constant dense<0.000000e+00> : vector<2x8x8xf32>
    %83 = tpu.matmul %82, %70, %cst_25 {dimension_numbers = #tpu.dot_dimension_numbers<[2], [1], [1], [2], [0, 0, 0, 1, 1, 2], [0], [0]>} : vector<2x8x8xf32>, vector<2x8x8xf32>, vector<2x8x8xf32> -> vector<2x8x8xf32>
    "tpu.trace_stop"() : () -> ()
    %84 = vector.shape_cast %83 : vector<2x8x8xf32> to vector<16x8xf32>
    %85 = tpu.concatenate %33, %50, %67, %84 in 1 : vector<16x8xf32>, vector<16x8xf32>, vector<16x8xf32>, vector<16x8xf32> -> vector<16x32xf32>
    %c0_26 = arith.constant 0 : index
    %c0_27 = arith.constant 0 : index
    %86 = vector.load %arg5[%c0_26, %c0_27] : memref<32x32xf32, #tpu.memory_space<vmem>>, vector<32x32xf32>
    %cst_28 = arith.constant dense<0.000000e+00> : vector<16x32xf32>
    %87 = tpu.matmul %85, %86, %cst_28 {dimension_numbers = #tpu.dot_dimension_numbers<[1], [0], [0], [1], [0, 0, 1, 1], [], []>} : vector<16x32xf32>, vector<32x32xf32>, vector<16x32xf32> -> vector<16x32xf32>
    %c0_29 = arith.constant 0 : index
    %c0_30 = arith.constant 0 : index
    %88 = vector.load %arg6[%c0_29, %c0_30] : memref<1x32xf32, #tpu.memory_space<vmem>>, vector<1x32xf32>
    %89 = vector.broadcast %88 : vector<1x32xf32> to vector<16x32xf32>
    %90 = arith.addf %87, %89 : vector<16x32xf32>
    %91 = arith.addf %0, %90 : vector<16x32xf32>
    %c0_31 = arith.constant 0 : index
    %c0_32 = arith.constant 0 : index
    %92 = vector.load %arg7[%c0_31, %c0_32] : memref<1x32xf32, #tpu.memory_space<vmem>>, vector<1x32xf32>
    %c0_33 = arith.constant 0 : index
    %c0_34 = arith.constant 0 : index
    %93 = vector.load %arg8[%c0_33, %c0_34] : memref<1x32xf32, #tpu.memory_space<vmem>>, vector<1x32xf32>
    %cst_35 = arith.constant dense<0.000000e+00> : vector<16xf32>
    %94 = vector.multi_reduction <add>, %91, %cst_35 [1] : vector<16x32xf32> to vector<16xf32>
    %95 = vector.shape_cast %94 : vector<16xf32> to vector<16x1xf32>
    %cst_36 = arith.constant 3.200000e+01 : f32
    %96 = vector.broadcast %cst_36 : f32 to vector<16x1xf32>
    %97 = arith.divf %95, %96 : vector<16x1xf32>
    %98 = vector.broadcast %97 : vector<16x1xf32> to vector<16x32xf32>
    %99 = arith.subf %91, %98 : vector<16x32xf32>
    %100 = arith.mulf %99, %99 : vector<16x32xf32>
    %cst_37 = arith.constant dense<0.000000e+00> : vector<16xf32>
    %101 = vector.multi_reduction <add>, %100, %cst_37 [1] : vector<16x32xf32> to vector<16xf32>
    %102 = vector.shape_cast %101 : vector<16xf32> to vector<16x1xf32>
    %cst_38 = arith.constant 3.200000e+01 : f32
    %103 = vector.broadcast %cst_38 : f32 to vector<16x1xf32>
    %104 = arith.divf %102, %103 : vector<16x1xf32>
    %cst_39 = arith.constant 9.99999997E-7 : f32
    %105 = vector.broadcast %cst_39 : f32 to vector<16x1xf32>
    %106 = arith.addf %104, %105 : vector<16x1xf32>
    %107 = math.rsqrt %106 : vector<16x1xf32>
    %108 = vector.broadcast %107 : vector<16x1xf32> to vector<16x32xf32>
    %109 = arith.mulf %99, %108 : vector<16x32xf32>
    %110 = vector.broadcast %92 : vector<1x32xf32> to vector<16x32xf32>
    %111 = arith.mulf %109, %110 : vector<16x32xf32>
    %112 = vector.broadcast %93 : vector<1x32xf32> to vector<16x32xf32>
    %113 = arith.addf %111, %112 : vector<16x32xf32>
    %c0_40 = arith.constant 0 : index
    %c0_41 = arith.constant 0 : index
    %114 = vector.load %arg9[%c0_40, %c0_41] : memref<32x64xf32, #tpu.memory_space<vmem>>, vector<32x64xf32>
    %cst_42 = arith.constant dense<0.000000e+00> : vector<16x64xf32>
    %115 = tpu.matmul %113, %114, %cst_42 {dimension_numbers = #tpu.dot_dimension_numbers<[1], [0], [0], [1], [0, 0, 1, 1], [], []>} : vector<16x32xf32>, vector<32x64xf32>, vector<16x64xf32> -> vector<16x64xf32>
    %c0_43 = arith.constant 0 : index
    %c0_44 = arith.constant 0 : index
    %116 = vector.load %arg10[%c0_43, %c0_44] : memref<1x64xf32, #tpu.memory_space<vmem>>, vector<1x64xf32>
    %117 = vector.broadcast %116 : vector<1x64xf32> to vector<16x64xf32>
    %118 = arith.addf %115, %117 : vector<16x64xf32>
    %cst_45 = arith.constant 5.000000e-01 : f32
    %119 = vector.broadcast %cst_45 : f32 to vector<16x64xf32>
    %120 = arith.mulf %119, %118 : vector<16x64xf32>
    %cst_46 = arith.constant 2.000000e+00 : f32
    %121 = math.sqrt %cst_46 : f32
    %cst_47 = arith.constant 1.000000e+00 : f32
    %122 = arith.divf %cst_47, %121 : f32
    %123 = vector.broadcast %122 : f32 to vector<16x64xf32>
    %124 = arith.mulf %118, %123 : vector<16x64xf32>
    %125 = math.erf %124 : vector<16x64xf32>
    %cst_48 = arith.constant 1.000000e+00 : f32
    %126 = vector.broadcast %cst_48 : f32 to vector<16x64xf32>
    %127 = arith.addf %126, %125 : vector<16x64xf32>
    %128 = arith.mulf %120, %127 : vector<16x64xf32>
    %c0_49 = arith.constant 0 : index
    %c0_50 = arith.constant 0 : index
    %129 = vector.load %arg11[%c0_49, %c0_50] : memref<64x32xf32, #tpu.memory_space<vmem>>, vector<64x32xf32>
    %cst_51 = arith.constant dense<0.000000e+00> : vector<16x32xf32>
    %130 = tpu.matmul %128, %129, %cst_51 {dimension_numbers = #tpu.dot_dimension_numbers<[1], [0], [0], [1], [0, 0, 1, 1], [], []>} : vector<16x64xf32>, vector<64x32xf32>, vector<16x32xf32> -> vector<16x32xf32>
    %c0_52 = arith.constant 0 : index
    %c0_53 = arith.constant 0 : index
    %131 = vector.load %arg12[%c0_52, %c0_53] : memref<1x32xf32, #tpu.memory_space<vmem>>, vector<1x32xf32>
    %132 = vector.broadcast %131 : vector<1x32xf32> to vector<16x32xf32>
    %133 = arith.addf %130, %132 : vector<16x32xf32>
    %134 = arith.addf %133, %113 : vector<16x32xf32>
    %135 = arith.addf %134, %0 : vector<16x32xf32>
    %c0_54 = arith.constant 0 : index
    %c0_55 = arith.constant 0 : index
    %136 = vector.load %arg13[%c0_54, %c0_55] : memref<1x32xf32, #tpu.memory_space<vmem>>, vector<1x32xf32>
    %c0_56 = arith.constant 0 : index
    %c0_57 = arith.constant 0 : index
    %137 = vector.load %arg14[%c0_56, %c0_57] : memref<1x32xf32, #tpu.memory_space<vmem>>, vector<1x32xf32>
    %cst_58 = arith.constant dense<0.000000e+00> : vector<16xf32>
    %138 = vector.multi_reduction <add>, %135, %cst_58 [1] : vector<16x32xf32> to vector<16xf32>
    %139 = vector.shape_cast %138 : vector<16xf32> to vector<16x1xf32>
    %cst_59 = arith.constant 3.200000e+01 : f32
    %140 = vector.broadcast %cst_59 : f32 to vector<16x1xf32>
    %141 = arith.divf %139, %140 : vector<16x1xf32>
    %142 = vector.broadcast %141 : vector<16x1xf32> to vector<16x32xf32>
    %143 = arith.subf %135, %142 : vector<16x32xf32>
    %144 = arith.mulf %143, %143 : vector<16x32xf32>
    %cst_60 = arith.constant dense<0.000000e+00> : vector<16xf32>
    %145 = vector.multi_reduction <add>, %144, %cst_60 [1] : vector<16x32xf32> to vector<16xf32>
    %146 = vector.shape_cast %145 : vector<16xf32> to vector<16x1xf32>
    %cst_61 = arith.constant 3.200000e+01 : f32
    %147 = vector.broadcast %cst_61 : f32 to vector<16x1xf32>
    %148 = arith.divf %146, %147 : vector<16x1xf32>
    %cst_62 = arith.constant 9.99999997E-7 : f32
    %149 = vector.broadcast %cst_62 : f32 to vector<16x1xf32>
    %150 = arith.addf %148, %149 : vector<16x1xf32>
    %151 = math.rsqrt %150 : vector<16x1xf32>
    %152 = vector.broadcast %151 : vector<16x1xf32> to vector<16x32xf32>
    %153 = arith.mulf %143, %152 : vector<16x32xf32>
    %154 = vector.broadcast %136 : vector<1x32xf32> to vector<16x32xf32>
    %155 = arith.mulf %153, %154 : vector<16x32xf32>
    %156 = vector.broadcast %137 : vector<1x32xf32> to vector<16x32xf32>
    %157 = arith.addf %155, %156 : vector<16x32xf32>
    %c0_63 = arith.constant 0 : index
    %c0_64 = arith.constant 0 : index
    %158 = vector.load %arg15[%c0_63, %c0_64] : memref<16x32xf32, #tpu.memory_space<vmem>>, vector<16x32xf32>
    tpu.vector_store %arg15[%c0_63, %c0_64], %157 {strides = array<i32>} : memref<16x32xf32, #tpu.memory_space<vmem>>, vector<16x32xf32>,
    return
  }
  func.func @transform_0(%arg0: i32) -> (i32, i32) {
    %c0_i32 = arith.constant 0 : i32
    %c0_i32_0 = arith.constant 0 : i32
    return %arg0, %c0_i32 : i32, i32
  }
  func.func @transform_1(%arg0: i32) -> (i32, i32, i32) {
    %c0_i32 = arith.constant 0 : i32
    %c0_i32_0 = arith.constant 0 : i32
    %c0_i32_1 = arith.constant 0 : i32
    return %arg0, %c0_i32, %c0_i32_0 : i32, i32, i32
  }
  func.func @transform_2(%arg0: i32) -> (i32, i32) {
    %c0_i32 = arith.constant 0 : i32
    %c0_i32_0 = arith.constant 0 : i32
    %c0_i32_1 = arith.constant 0 : i32
    return %c0_i32, %c0_i32_0 : i32, i32
  }
  func.func @transform_3(%arg0: i32) -> (i32, i32) {
    %c0_i32 = arith.constant 0 : i32
    %c0_i32_0 = arith.constant 0 : i32
    %c0_i32_1 = arith.constant 0 : i32
    return %c0_i32, %c0_i32_0 : i32, i32
  }
  func.func @transform_4(%arg0: i32) -> (i32, i32) {
    %c0_i32 = arith.constant 0 : i32
    %c0_i32_0 = arith.constant 0 : i32
    %c0_i32_1 = arith.constant 0 : i32
    return %c0_i32, %c0_i32_0 : i32, i32
  }
  func.func @transform_5(%arg0: i32) -> (i32, i32) {
    %c0_i32 = arith.constant 0 : i32
    %c0_i32_0 = arith.constant 0 : i32
    %c0_i32_1 = arith.constant 0 : i32
    return %c0_i32, %c0_i32_0 : i32, i32
  }
  func.func @transform_6(%arg0: i32) -> (i32, i32) {
    %c0_i32 = arith.constant 0 : i32
    %c0_i32_0 = arith.constant 0 : i32
    %c0_i32_1 = arith.constant 0 : i32
    return %c0_i32, %c0_i32_0 : i32, i32
  }
  func.func @transform_7(%arg0: i32) -> (i32, i32) {
    %c0_i32 = arith.constant 0 : i32
    %c0_i32_0 = arith.constant 0 : i32
    %c0_i32_1 = arith.constant 0 : i32
    return %c0_i32, %c0_i32_0 : i32, i32
  }
  func.func @transform_8(%arg0: i32) -> (i32, i32) {
    %c0_i32 = arith.constant 0 : i32
    %c0_i32_0 = arith.constant 0 : i32
    %c0_i32_1 = arith.constant 0 : i32
    return %c0_i32, %c0_i32_0 : i32, i32
  }
  func.func @transform_9(%arg0: i32) -> (i32, i32) {
    %c0_i32 = arith.constant 0 : i32
    %c0_i32_0 = arith.constant 0 : i32
    %c0_i32_1 = arith.constant 0 : i32
    return %c0_i32, %c0_i32_0 : i32, i32
  }
  func.func @transform_10(%arg0: i32) -> (i32, i32) {
    %c0_i32 = arith.constant 0 : i32
    %c0_i32_0 = arith.constant 0 : i32
    %c0_i32_1 = arith.constant 0 : i32
    return %c0_i32, %c0_i32_0 : i32, i32
  }
  func.func @transform_11(%arg0: i32) -> (i32, i32) {
    %c0_i32 = arith.constant 0 : i32
    %c0_i32_0 = arith.constant 0 : i32
    %c0_i32_1 = arith.constant 0 : i32
    return %c0_i32, %c0_i32_0 : i32, i32
  }
  func.func @transform_12(%arg0: i32) -> (i32, i32) {
    %c0_i32 = arith.constant 0 : i32
    %c0_i32_0 = arith.constant 0 : i32
    %c0_i32_1 = arith.constant 0 : i32
    return %c0_i32, %c0_i32_0 : i32, i32
  }
  func.func @transform_13(%arg0: i32) -> (i32, i32) {
    %c0_i32 = arith.constant 0 : i32
    %c0_i32_0 = arith.constant 0 : i32
    %c0_i32_1 = arith.constant 0 : i32
    return %c0_i32, %c0_i32_0 : i32, i32
  }
  func.func @transform_14(%arg0: i32) -> (i32, i32) {
    %c0_i32 = arith.constant 0 : i32
    %c0_i32_0 = arith.constant 0 : i32
    return %arg0, %c0_i32 : i32, i32
  }
}

</mosaic_0001>

<llo_original>
// kernel: tpu_custom_call.1
$region0: #{tpu_custom_call.1}
  #allocation0 [shape = 'u32[]', space=smem, size = 0x4, offset = 0x4, fixed_abs, tag = 'smem constant byte address 0x4 - core index']
  #allocation1 [shape = 'u32[72,128]{1,0:T(1,128)}', space=vmem, size = 0x9000, scoped, tag = 'internal scratch']
  %s0 = inlined_call_operand.hbm [shape: f32[16,32], index: 0, kind: input, shape index: {}]
  %s1 = inlined_call_operand.hbm [shape: f32[2,8,8], index: 1, kind: input, shape index: {}]
  %s2 = inlined_call_operand.vmem [shape: f32[32,96], index: 2, kind: input, shape index: {}]
  %s3 = inlined_call_operand.vmem [shape: f32[1,96], index: 3, kind: input, shape index: {}]
  %s4 = inlined_call_operand.vmem [shape: f32[32,32], index: 4, kind: input, shape index: {}]
  %s5 = inlined_call_operand.vmem [shape: f32[1,32], index: 5, kind: input, shape index: {}]
  %s6 = inlined_call_operand.vmem [shape: f32[1,32], index: 6, kind: input, shape index: {}]
  %s7 = inlined_call_operand.vmem [shape: f32[1,32], index: 7, kind: input, shape index: {}]
  %s8 = inlined_call_operand.vmem [shape: f32[32,64], index: 8, kind: input, shape index: {}]
  %s9 = inlined_call_operand.vmem [shape: f32[1,64], index: 9, kind: input, shape index: {}]
  %s10 = inlined_call_operand.vmem [shape: f32[64,32], index: 10, kind: input, shape index: {}]
  %s11 = inlined_call_operand.vmem [shape: f32[1,32], index: 11, kind: input, shape index: {}]
  %s12 = inlined_call_operand.vmem [shape: f32[1,32], index: 12, kind: input, shape index: {}]
  %s13 = inlined_call_operand.vmem [shape: f32[1,32], index: 13, kind: input, shape index: {}]
  %s14 = inlined_call_operand.hbm [shape: f32[16,32], index: 14, kind: output, shape index: {}]
  %s15 = sld [smem:[#allocation0]]
  $region74: #{tpu_custom_call.1} parent=0
    _
  %s17 = ssub.s32 1, %s15
  %s18 = scalar_select 0, %s17, %s15
  $region1: #{tpu_custom_call.1} parent=0
    #allocation2 [shape = 'u8[8192]{0}', space=vmem, size = 0x2000, scoped, tag = 'input window, operand 0, single buffered']
    #allocation3 [shape = 's32[1]{0}', space=sflag, size = 0x4, scoped, tag = 'scoped memory for tpu_custom_call.1']
    #allocation4 [shape = 's32[1]{0}', space=sflag, size = 0x4, scoped, tag = 'scoped memory for tpu_custom_call.1']
    #allocation5 [shape = 'u8[8192]{0}', space=vmem, size = 0x2000, scoped, tag = 'input window, operand 1, single buffered']
    #allocation6 [shape = 's32[1]{0}', space=sflag, size = 0x4, scoped, tag = 'scoped memory for tpu_custom_call.1']
    #allocation7 [shape = 'u8[8192]{0}', space=vmem, size = 0x2000, scoped, tag = 'output window, operand 0, single buffered']
    %19 = vsyncpa [#allocation3], 0
    %20 = vsyncpa [#allocation6], 0
    %21 = vsyncpa [#allocation4], 0
    // Predicated region
    $region2: #{tpu_custom_call.1} parent=1 // pred_check
      _
    $region3: #{tpu_custom_call.1} parent=1 // pred_check_branch
      %23 = sbr.rel (0) target = $region5
    $region4: #{tpu_custom_call.1} parent=1 // pred_region
      %25 = vsyncadd [#allocation3], 0
      %s26 = sshll.u32 %s0, 4
      %s27 = int_to_ptr.hbm [resolvable:$true] %s26
      %s28 = sshll.u32 [#allocation2], 4
      %s29 = int_to_ptr.vmem [resolvable:$true] %s28
      %34 = dma.hbm_to_vmem [thread:$0]  %s27, 256, %s29, [#allocation3], 128, 128, 8
    $region5: #{tpu_custom_call.1} parent=1 // pred_fallthru
      _
    // Predicated region
    $region6: #{tpu_custom_call.1} parent=1 // pred_check
      _
    $region7: #{tpu_custom_call.1} parent=1 // pred_check_branch
      %36 = sbr.rel (0) target = $region9
    $region8: #{tpu_custom_call.1} parent=1 // pred_region
      %38 = vsyncadd [#allocation6], 0
      %s39 = sshll.u32 %s1, 4
      %s40 = int_to_ptr.hbm [resolvable:$true] %s39
      %s41 = sshll.u32 [#allocation5], 4
      %s42 = int_to_ptr.vmem [resolvable:$true] %s41
      %47 = dma.hbm_to_vmem [thread:$0]  %s40, 256, %s42, [#allocation6], 128, 128, 8
    $region9: #{tpu_custom_call.1} parent=1 // pred_fallthru
      _
    // Predicated region
    $region10: #{tpu_custom_call.1} parent=1 // pred_check
      _
    $region11: #{tpu_custom_call.1} parent=1 // pred_check_branch
      %49 = sbr.rel (0) target = $region13
    $region12: #{tpu_custom_call.1} parent=1 // pred_region
      _
    $region13: #{tpu_custom_call.1} parent=1 // pred_fallthru
      _
    // Predicated region
    $region14: #{tpu_custom_call.1} parent=1 // pred_check
      _
    $region15: #{tpu_custom_call.1} parent=1 // pred_check_branch
      %51 = sbr.rel (0) target = $region17
    $region16: #{tpu_custom_call.1} parent=1 // pred_region
      _
    $region17: #{tpu_custom_call.1} parent=1 // pred_fallthru
      _
    // Predicated region
    $region18: #{tpu_custom_call.1} parent=1 // pred_check
      _
    $region19: #{tpu_custom_call.1} parent=1 // pred_check_branch
      %53 = sbr.rel (0) target = $region21
    $region20: #{tpu_custom_call.1} parent=1 // pred_region
      _
    $region21: #{tpu_custom_call.1} parent=1 // pred_fallthru
      _
    // Predicated region
    $region22: #{tpu_custom_call.1} parent=1 // pred_check
      _
    $region23: #{tpu_custom_call.1} parent=1 // pred_check_branch
      %55 = sbr.rel (0) target = $region25
    $region24: #{tpu_custom_call.1} parent=1 // pred_region
      _
    $region25: #{tpu_custom_call.1} parent=1 // pred_fallthru
      _
    // Predicated region
    $region26: #{tpu_custom_call.1} parent=1 // pred_check
      _
    $region27: #{tpu_custom_call.1} parent=1 // pred_check_branch
      %57 = sbr.rel (0) target = $region29
    $region28: #{tpu_custom_call.1} parent=1 // pred_region
      _
    $region29: #{tpu_custom_call.1} parent=1 // pred_fallthru
      _
    // Predicated region
    $region30: #{tpu_custom_call.1} parent=1 // pred_check
      _
    $region31: #{tpu_custom_call.1} parent=1 // pred_check_branch
      %59 = sbr.rel (0) target = $region33
    $region32: #{tpu_custom_call.1} parent=1 // pred_region
      _
    $region33: #{tpu_custom_call.1} parent=1 // pred_fallthru
      _
    // Predicated region
    $region34: #{tpu_custom_call.1} parent=1 // pred_check
      _
    $region35: #{tpu_custom_call.1} parent=1 // pred_check_branch
      %61 = sbr.rel (0) target = $region37
    $region36: #{tpu_custom_call.1} parent=1 // pred_region
      _
    $region37: #{tpu_custom_call.1} parent=1 // pred_fallthru
      _
    // Predicated region
    $region38: #{tpu_custom_call.1} parent=1 // pred_check
      _
    $region39: #{tpu_custom_call.1} parent=1 // pred_check_branch
      %63 = sbr.rel (0) target = $region41
    $region40: #{tpu_custom_call.1} parent=1 // pred_region
      _
    $region41: #{tpu_custom_call.1} parent=1 // pred_fallthru
      _
    // Predicated region
    $region42: #{tpu_custom_call.1} parent=1 // pred_check
      _
    $region43: #{tpu_custom_call.1} parent=1 // pred_check_branch
      %65 = sbr.rel (0) target = $region45
    $region44: #{tpu_custom_call.1} parent=1 // pred_region
      _
    $region45: #{tpu_custom_call.1} parent=1 // pred_fallthru
      _
    // Predicated region
    $region46: #{tpu_custom_call.1} parent=1 // pred_check
      _
    $region47: #{tpu_custom_call.1} parent=1 // pred_check_branch
      %67 = sbr.rel (0) target = $region49
    $region48: #{tpu_custom_call.1} parent=1 // pred_region
      _
    $region49: #{tpu_custom_call.1} parent=1 // pred_fallthru
      _
    // Predicated region
    $region50: #{tpu_custom_call.1} parent=1 // pred_check
      _
    $region51: #{tpu_custom_call.1} parent=1 // pred_check_branch
      %69 = sbr.rel (0) target = $region53
    $region52: #{tpu_custom_call.1} parent=1 // pred_region
      _
    $region53: #{tpu_custom_call.1} parent=1 // pred_fallthru
      _
    // Predicated region
    $region54: #{tpu_custom_call.1} parent=1 // pred_check
      _
    $region55: #{tpu_custom_call.1} parent=1 // pred_check_branch
      %71 = sbr.rel (0) target = $region57
    $region56: #{tpu_custom_call.1} parent=1 // pred_region
      _
    $region57: #{tpu_custom_call.1} parent=1 // pred_fallthru
      _
    // Predicated region
    $region58: #{tpu_custom_call.1} parent=1 // pred_check
      _
    $region59: #{tpu_custom_call.1} parent=1 // pred_check_branch
      %73 = sbr.rel (0) target = $region61
    $region60: #{tpu_custom_call.1} parent=1 // pred_region
      %75 = dma.done [#allocation3], 256
    $region61: #{tpu_custom_call.1} parent=1 // pred_fallthru
      _
    // Predicated region
    $region62: #{tpu_custom_call.1} parent=1 // pred_check
      _
    $region63: #{tpu_custom_call.1} parent=1 // pred_check_branch
      %77 = sbr.rel (0) target = $region65
    $region64: #{tpu_custom_call.1} parent=1 // pred_region
      %79 = dma.done [#allocation6], 256
    $region65: #{tpu_custom_call.1} parent=1 // pred_fallthru
      _
    %v80 = vld [vmem:[#allocation2] sm:$0xff]
    %v81 = vld [vmem:[#allocation2 + $0x8] sm:$0xff]
    %v82 = vld [vmem:[#allocation5] sm:$0xff]
    %v83 = vld [vmem:[#allocation5 + $0x8] sm:$0xff]
    %v84 = vld [vmem:[%s2] sm:$0xff]
    %v85 = vld [vmem:[%s2 + $0x8] sm:$0xff]
    %v86 = vld [vmem:[%s2 + $0x10] sm:$0xff]
    %v87 = vld [vmem:[%s2 + $0x18] sm:$0xff]
    %v88 = vld [vmem:[%s3] sm:$0x1]
    %v90 = vperm.slane %v88, 0
    %vm92 = vcmask 261120
    %v94 = vsel %vm92, %v80, 0
    %v97 = vsel %vm92, %v81, 0
    %99 = vmatpush.msra.mxu0 0.0
    %100 = vmatpush.msra.mxu0 0.0
    %101 = vmatpush.msra.mxu0 0.0
    %102 = vmatpush.msra.mxu0 0.0
    %103 = vmatpush.msra.mxu0 0.0
    %104 = vmatpush.msra.mxu0 0.0
    %105 = vmatpush.msra.mxu0 0.0
    %106 = vmatpush.msra.mxu0 0.0
    %107 = vmatpush.msra.mxu0 0.0
    %108 = vmatpush.msra.mxu0 0.0
    %109 = vmatpush.msra.mxu0 0.0
    %110 = vmatpush.msra.mxu0 0.0
    %111 = vmatpush.msra.mxu0 %v87
    %112 = vmatpush.msra.mxu0 %v86
    %113 = vmatpush.msra.mxu0 %v85
    %114 = vmatpush.msra.mxu0 %v84
    %115 = vmatmul.f32.gmra.mxu0 %v94
    %v116 = vpop.f32.mrf.mxu0
    %v117 = vadd.f32 %v90, %v116
    %118 = vmatmul.f32.gmra.mxu0 %v97
    %v119 = vpop.f32.mrf.mxu0
    %v120 = vadd.f32 %v90, %v119
    %121 = vdwg.mxu0
    %v122 = vmul.f32 %v117, 0.17677669
    %v123 = vmul.f32 %v120, 0.17677669
    %125 = vrot.lane.b32.xlu0 %v117, 96
    %v126 = vpop.permute.xlu0 %125
    %vm127 = vcmask 64512
    %v129 = vsel %vm127, %v122, 0
    %v131 = vsel %vm127, %v126, 0
    %133 = vmatpush.xpose.msra.mxu0 0.0
    %134 = vmatpush.xpose.msra.mxu0 0.0
    %135 = vmatpush.xpose.msra.mxu0 0.0
    %136 = vmatpush.xpose.msra.mxu0 0.0
    %137 = vmatpush.xpose.msra.mxu0 0.0
    %138 = vmatpush.xpose.msra.mxu0 0.0
    %139 = vmatpush.xpose.msra.mxu0 0.0
    %140 = vmatpush.xpose.msra.mxu0 0.0
    %141 = vmatpush.xpose.msra.mxu0 0.0
    %142 = vmatpush.xpose.msra.mxu0 0.0
    %143 = vmatpush.xpose.msra.mxu0 0.0
    %144 = vmatpush.xpose.msra.mxu0 0.0
    %145 = vmatpush.xpose.msra.mxu0 0.0
    %146 = vmatpush.xpose.msra.mxu0 0.0
    %147 = vmatpush.xpose.msra.mxu0 0.0
    %148 = vmatpush.xpose.msra.mxu0 %v131
    %149 = vmatmul.f32.gmra.mxu0 %v129
    %v150 = vpop.f32.mrf.mxu0
    %v151 = vadd.f32 %v82, %v150
    %152 = vdwg.mxu0
    %154 = vrot.lane.b32.xlu0 %v120, 96
    %v155 = vpop.permute.xlu0 %154
    %v157 = vsel %vm127, %v123, 0
    %v159 = vsel %vm127, %v155, 0
    %161 = vmatpush.xpose.msra.mxu0 0.0
    %162 = vmatpush.xpose.msra.mxu0 0.0
    %163 = vmatpush.xpose.msra.mxu0 0.0
    %164 = vmatpush.xpose.msra.mxu0 0.0
    %165 = vmatpush.xpose.msra.mxu0 0.0
    %166 = vmatpush.xpose.msra.mxu0 0.0
    %167 = vmatpush.xpose.msra.mxu0 0.0
    %168 = vmatpush.xpose.msra.mxu0 0.0
    %169 = vmatpush.xpose.msra.mxu0 0.0
    %170 = vmatpush.xpose.msra.mxu0 0.0
    %171 = vmatpush.xpose.msra.mxu0 0.0
    %172 = vmatpush.xpose.msra.mxu0 0.0
    %173 = vmatpush.xpose.msra.mxu0 0.0
    %174 = vmatpush.xpose.msra.mxu0 0.0
    %175 = vmatpush.xpose.msra.mxu0 0.0
    %176 = vmatpush.xpose.msra.mxu0 %v159
    %177 = vmatmul.f32.gmra.mxu0 %v157
    %v178 = vpop.f32.mrf.mxu0
    %v179 = vadd.f32 %v83, %v178
    %180 = vdwg.mxu0
    %v181 = vsel %vm127, %v151, -inf
    %182 = vmax.xlane.f32.xlu0 %v181
    %v183 = vpop.xlane.xlu0 %182
    %v184 = vsel %vm127, %v179, -inf
    %185 = vmax.xlane.f32.xlu0 %v184
    %v186 = vpop.xlane.xlu0 %185
    %v187 = vsub.f32 %v151, %v183
    %v188 = vsub.f32 %v179, %v186
    %v189 = vmul.f32 %v187, 1.442695
    %v190 = vpow.pop %v189
    %v191 = vmul.f32 %v188, 1.442695
    %v192 = vpow.pop %v191
    %v193 = vsel %vm127, %v190, 0.0
    %194 = vadd.xlane.f32.xlu0 %v193
    %v195 = vpop.xlane.xlu0 %194
    %v196 = vsel %vm127, %v192, 0.0
    %197 = vadd.xlane.f32.xlu0 %v196
    %v198 = vpop.xlane.xlu0 %197
    %v199 = vrcp.pop %v195
    %v200 = vrcp.pop %v198
    %v201 = vmul.f32 %v190, %v199
    %v202 = vmul.f32 %v192, %v200
    %203 = vrot.lane.b32.xlu0 %v117, 64
    %v204 = vpop.permute.xlu0 %203
    %v207 = vsel %vm127, %v201, 0
    %209 = vmatpush.msra.mxu0 0.0
    %210 = vmatpush.msra.mxu0 0.0
    %211 = vmatpush.msra.mxu0 0.0
    %212 = vmatpush.msra.mxu0 0.0
    %213 = vmatpush.msra.mxu0 0.0
    %214 = vmatpush.msra.mxu0 0.0
    %215 = vmatpush.msra.mxu0 0.0
    %216 = vmatpush.msra.mxu0 0.0
    %217 = vmatpush.msra.mxu0 0.0
    %218 = vmatpush.msra.mxu0 0.0
    %219 = vmatpush.msra.mxu0 0.0
    %220 = vmatpush.msra.mxu0 0.0
    %221 = vmatpush.msra.mxu0 0.0
    %222 = vmatpush.msra.mxu0 0.0
    %223 = vmatpush.msra.mxu0 0.0
    %224 = vmatpush.msra.mxu0 %v204
    %225 = vmatmul.f32.gmra.mxu0 %v207
    %v226 = vpop.f32.mrf.mxu0
    %v227 = vadd.f32 0.0, %v226
    %228 = vdwg.mxu0
    %229 = vrot.lane.b32.xlu0 %v120, 64
    %v230 = vpop.permute.xlu0 %229
    %v233 = vsel %vm127, %v202, 0
    %235 = vmatpush.msra.mxu0 0.0
    %236 = vmatpush.msra.mxu0 0.0
    %237 = vmatpush.msra.mxu0 0.0
    %238 = vmatpush.msra.mxu0 0.0
    %239 = vmatpush.msra.mxu0 0.0
    %240 = vmatpush.msra.mxu0 0.0
    %241 = vmatpush.msra.mxu0 0.0
    %242 = vmatpush.msra.mxu0 0.0
    %243 = vmatpush.msra.mxu0 0.0
    %244 = vmatpush.msra.mxu0 0.0
    %245 = vmatpush.msra.mxu0 0.0
    %246 = vmatpush.msra.mxu0 0.0
    %247 = vmatpush.msra.mxu0 0.0
    %248 = vmatpush.msra.mxu0 0.0
    %249 = vmatpush.msra.mxu0 0.0
    %250 = vmatpush.msra.mxu0 %v230
    %251 = vmatmul.f32.gmra.mxu0 %v233
    %v252 = vpop.f32.mrf.mxu0
    %v253 = vadd.f32 0.0, %v252
    %254 = vdwg.mxu0
    %255 = vrot.lane.b32.xlu0 %v122, 120
    %v256 = vpop.permute.xlu0 %255
    %257 = vrot.lane.b32.xlu0 %v117, 88
    %v258 = vpop.permute.xlu0 %257
    %v259 = vsel %vm127, %v256, 0
    %v261 = vsel %vm127, %v258, 0
    %263 = vmatpush.xpose.msra.mxu0 0.0
    %264 = vmatpush.xpose.msra.mxu0 0.0
    %265 = vmatpush.xpose.msra.mxu0 0.0
    %266 = vmatpush.xpose.msra.mxu0 0.0
    %267 = vmatpush.xpose.msra.mxu0 0.0
    %268 = vmatpush.xpose.msra.mxu0 0.0
    %269 = vmatpush.xpose.msra.mxu0 0.0
    %270 = vmatpush.xpose.msra.mxu0 0.0
    %271 = vmatpush.xpose.msra.mxu0 0.0
    %272 = vmatpush.xpose.msra.mxu0 0.0
    %273 = vmatpush.xpose.msra.mxu0 0.0
    %274 = vmatpush.xpose.msra.mxu0 0.0
    %275 = vmatpush.xpose.msra.mxu0 0.0
    %276 = vmatpush.xpose.msra.mxu0 0.0
    %277 = vmatpush.xpose.msra.mxu0 0.0
    %278 = vmatpush.xpose.msra.mxu0 %v261
    %279 = vmatmul.f32.gmra.mxu0 %v259
    %v280 = vpop.f32.mrf.mxu0
    %v281 = vadd.f32 %v82, %v280
    %282 = vdwg.mxu0
    %283 = vrot.lane.b32.xlu0 %v123, 120
    %v284 = vpop.permute.xlu0 %283
    %285 = vrot.lane.b32.xlu0 %v120, 88
    %v286 = vpop.permute.xlu0 %285
    %v287 = vsel %vm127, %v284, 0
    %v289 = vsel %vm127, %v286, 0
    %291 = vmatpush.xpose.msra.mxu0 0.0
    %292 = vmatpush.xpose.msra.mxu0 0.0
    %293 = vmatpush.xpose.msra.mxu0 0.0
    %294 = vmatpush.xpose.msra.mxu0 0.0
    %295 = vmatpush.xpose.msra.mxu0 0.0
    %296 = vmatpush.xpose.msra.mxu0 0.0
    %297 = vmatpush.xpose.msra.mxu0 0.0
    %298 = vmatpush.xpose.msra.mxu0 0.0
    %299 = vmatpush.xpose.msra.mxu0 0.0
    %300 = vmatpush.xpose.msra.mxu0 0.0
    %301 = vmatpush.xpose.msra.mxu0 0.0
    %302 = vmatpush.xpose.msra.mxu0 0.0
    %303 = vmatpush.xpose.msra.mxu0 0.0
    %304 = vmatpush.xpose.msra.mxu0 0.0
    %305 = vmatpush.xpose.msra.mxu0 0.0
    %306 = vmatpush.xpose.msra.mxu0 %v289
    %307 = vmatmul.f32.gmra.mxu0 %v287
    %v308 = vpop.f32.mrf.mxu0
    %v309 = vadd.f32 %v83, %v308
    %310 = vdwg.mxu0
    %v311 = vsel %vm127, %v281, -inf
    %312 = vmax.xlane.f32.xlu0 %v311
    %v313 = vpop.xlane.xlu0 %312
    %v314 = vsel %vm127, %v309, -inf
    %315 = vmax.xlane.f32.xlu0 %v314
    %v316 = vpop.xlane.xlu0 %315
    %v317 = vsub.f32 %v281, %v313
    %v318 = vsub.f32 %v309, %v316
    %v319 = vmul.f32 %v317, 1.442695
    %v320 = vpow.pop %v319
    %v321 = vmul.f32 %v318, 1.442695
    %v322 = vpow.pop %v321
    %v323 = vsel %vm127, %v320, 0.0
    %324 = vadd.xlane.f32.xlu0 %v323
    %v325 = vpop.xlane.xlu0 %324
    %v326 = vsel %vm127, %v322, 0.0
    %327 = vadd.xlane.f32.xlu0 %v326
    %v328 = vpop.xlane.xlu0 %327
    %v329 = vrcp.pop %v325
    %v330 = vrcp.pop %v328
    %v331 = vmul.f32 %v320, %v329
    %v332 = vmul.f32 %v322, %v330
    %333 = vrot.lane.b32.xlu0 %v117, 56
    %v334 = vpop.permute.xlu0 %333
    %v337 = vsel %vm127, %v331, 0
    %339 = vmatpush.msra.mxu0 0.0
    %340 = vmatpush.msra.mxu0 0.0
    %341 = vmatpush.msra.mxu0 0.0
    %342 = vmatpush.msra.mxu0 0.0
    %343 = vmatpush.msra.mxu0 0.0
    %344 = vmatpush.msra.mxu0 0.0
    %345 = vmatpush.msra.mxu0 0.0
    %346 = vmatpush.msra.mxu0 0.0
    %347 = vmatpush.msra.mxu0 0.0
    %348 = vmatpush.msra.mxu0 0.0
    %349 = vmatpush.msra.mxu0 0.0
    %350 = vmatpush.msra.mxu0 0.0
    %351 = vmatpush.msra.mxu0 0.0
    %352 = vmatpush.msra.mxu0 0.0
    %353 = vmatpush.msra.mxu0 0.0
    %354 = vmatpush.msra.mxu0 %v334
    %355 = vmatmul.f32.gmra.mxu0 %v337
    %v356 = vpop.f32.mrf.mxu0
    %v357 = vadd.f32 0.0, %v356
    %358 = vdwg.mxu0
    %359 = vrot.lane.b32.xlu0 %v120, 56
    %v360 = vpop.permute.xlu0 %359
    %v363 = vsel %vm127, %v332, 0
    %365 = vmatpush.msra.mxu0 0.0
    %366 = vmatpush.msra.mxu0 0.0
    %367 = vmatpush.msra.mxu0 0.0
    %368 = vmatpush.msra.mxu0 0.0
    %369 = vmatpush.msra.mxu0 0.0
    %370 = vmatpush.msra.mxu0 0.0
    %371 = vmatpush.msra.mxu0 0.0
    %372 = vmatpush.msra.mxu0 0.0
    %373 = vmatpush.msra.mxu0 0.0
    %374 = vmatpush.msra.mxu0 0.0
    %375 = vmatpush.msra.mxu0 0.0
    %376 = vmatpush.msra.mxu0 0.0
    %377 = vmatpush.msra.mxu0 0.0
    %378 = vmatpush.msra.mxu0 0.0
    %379 = vmatpush.msra.mxu0 0.0
    %380 = vmatpush.msra.mxu0 %v360
    %381 = vmatmul.f32.gmra.mxu0 %v363
    %v382 = vpop.f32.mrf.mxu0
    %v383 = vadd.f32 0.0, %v382
    %384 = vdwg.mxu0
    %385 = vrot.lane.b32.xlu0 %v122, 112
    %v386 = vpop.permute.xlu0 %385
    %387 = vrot.lane.b32.xlu0 %v117, 80
    %v388 = vpop.permute.xlu0 %387
    %v389 = vsel %vm127, %v386, 0
    %v391 = vsel %vm127, %v388, 0
    %393 = vmatpush.xpose.msra.mxu0 0.0
    %394 = vmatpush.xpose.msra.mxu0 0.0
    %395 = vmatpush.xpose.msra.mxu0 0.0
    %396 = vmatpush.xpose.msra.mxu0 0.0
    %397 = vmatpush.xpose.msra.mxu0 0.0
    %398 = vmatpush.xpose.msra.mxu0 0.0
    %399 = vmatpush.xpose.msra.mxu0 0.0
    %400 = vmatpush.xpose.msra.mxu0 0.0
    %401 = vmatpush.xpose.msra.mxu0 0.0
    %402 = vmatpush.xpose.msra.mxu0 0.0
    %403 = vmatpush.xpose.msra.mxu0 0.0
    %404 = vmatpush.xpose.msra.mxu0 0.0
    %405 = vmatpush.xpose.msra.mxu0 0.0
    %406 = vmatpush.xpose.msra.mxu0 0.0
    %407 = vmatpush.xpose.msra.mxu0 0.0
    %408 = vmatpush.xpose.msra.mxu0 %v391
    %409 = vmatmul.f32.gmra.mxu0 %v389
    %v410 = vpop.f32.mrf.mxu0
    %v411 = vadd.f32 %v82, %v410
    %412 = vdwg.mxu0
    %413 = vrot.lane.b32.xlu0 %v123, 112
    %v414 = vpop.permute.xlu0 %413
    %415 = vrot.lane.b32.xlu0 %v120, 80
    %v416 = vpop.permute.xlu0 %415
    %v417 = vsel %vm127, %v414, 0
    %v419 = vsel %vm127, %v416, 0
    %421 = vmatpush.xpose.msra.mxu0 0.0
    %422 = vmatpush.xpose.msra.mxu0 0.0
    %423 = vmatpush.xpose.msra.mxu0 0.0
    %424 = vmatpush.xpose.msra.mxu0 0.0
    %425 = vmatpush.xpose.msra.mxu0 0.0
    %426 = vmatpush.xpose.msra.mxu0 0.0
    %427 = vmatpush.xpose.msra.mxu0 0.0
    %428 = vmatpush.xpose.msra.mxu0 0.0
    %429 = vmatpush.xpose.msra.mxu0 0.0
    %430 = vmatpush.xpose.msra.mxu0 0.0
    %431 = vmatpush.xpose.msra.mxu0 0.0
    %432 = vmatpush.xpose.msra.mxu0 0.0
    %433 = vmatpush.xpose.msra.mxu0 0.0
    %434 = vmatpush.xpose.msra.mxu0 0.0
    %435 = vmatpush.xpose.msra.mxu0 0.0
    %436 = vmatpush.xpose.msra.mxu0 %v419
    %437 = vmatmul.f32.gmra.mxu0 %v417
    %v438 = vpop.f32.mrf.mxu0
    %v439 = vadd.f32 %v83, %v438
    %440 = vdwg.mxu0
    %v441 = vsel %vm127, %v411, -inf
    %442 = vmax.xlane.f32.xlu0 %v441
    %v443 = vpop.xlane.xlu0 %442
    %v444 = vsel %vm127, %v439, -inf
    %445 = vmax.xlane.f32.xlu0 %v444
    %v446 = vpop.xlane.xlu0 %445
    %v447 = vsub.f32 %v411, %v443
    %v448 = vsub.f32 %v439, %v446
    %v449 = vmul.f32 %v447, 1.442695
    %v450 = vpow.pop %v449
    %v451 = vmul.f32 %v448, 1.442695
    %v452 = vpow.pop %v451
    %v453 = vsel %vm127, %v450, 0.0
    %454 = vadd.xlane.f32.xlu0 %v453
    %v455 = vpop.xlane.xlu0 %454
    %v456 = vsel %vm127, %v452, 0.0
    %457 = vadd.xlane.f32.xlu0 %v456
    %v458 = vpop.xlane.xlu0 %457
    %v459 = vrcp.pop %v455
    %v460 = vrcp.pop %v458
    %v461 = vmul.f32 %v450, %v459
    %v462 = vmul.f32 %v452, %v460
    %463 = vrot.lane.b32.xlu0 %v117, 48
    %v464 = vpop.permute.xlu0 %463
    %v467 = vsel %vm127, %v461, 0
    %469 = vmatpush.msra.mxu0 0.0
    %470 = vmatpush.msra.mxu0 0.0
    %471 = vmatpush.msra.mxu0 0.0
    %472 = vmatpush.msra.mxu0 0.0
    %473 = vmatpush.msra.mxu0 0.0
    %474 = vmatpush.msra.mxu0 0.0
    %475 = vmatpush.msra.mxu0 0.0
    %476 = vmatpush.msra.mxu0 0.0
    %477 = vmatpush.msra.mxu0 0.0
    %478 = vmatpush.msra.mxu0 0.0
    %479 = vmatpush.msra.mxu0 0.0
    %480 = vmatpush.msra.mxu0 0.0
    %481 = vmatpush.msra.mxu0 0.0
    %482 = vmatpush.msra.mxu0 0.0
    %483 = vmatpush.msra.mxu0 0.0
    %484 = vmatpush.msra.mxu0 %v464
    %485 = vmatmul.f32.gmra.mxu0 %v467
    %v486 = vpop.f32.mrf.mxu0
    %v487 = vadd.f32 0.0, %v486
    %488 = vdwg.mxu0
    %489 = vrot.lane.b32.xlu0 %v120, 48
    %v490 = vpop.permute.xlu0 %489
    %v493 = vsel %vm127, %v462, 0
    %495 = vmatpush.msra.mxu0 0.0
    %496 = vmatpush.msra.mxu0 0.0
    %497 = vmatpush.msra.mxu0 0.0
    %498 = vmatpush.msra.mxu0 0.0
    %499 = vmatpush.msra.mxu0 0.0
    %500 = vmatpush.msra.mxu0 0.0
    %501 = vmatpush.msra.mxu0 0.0
    %502 = vmatpush.msra.mxu0 0.0
    %503 = vmatpush.msra.mxu0 0.0
    %504 = vmatpush.msra.mxu0 0.0
    %505 = vmatpush.msra.mxu0 0.0
    %506 = vmatpush.msra.mxu0 0.0
    %507 = vmatpush.msra.mxu0 0.0
    %508 = vmatpush.msra.mxu0 0.0
    %509 = vmatpush.msra.mxu0 0.0
    %510 = vmatpush.msra.mxu0 %v490
    %511 = vmatmul.f32.gmra.mxu0 %v493
    %v512 = vpop.f32.mrf.mxu0
    %v513 = vadd.f32 0.0, %v512
    %514 = vdwg.mxu0
    %515 = vrot.lane.b32.xlu0 %v122, 104
    %v516 = vpop.permute.xlu0 %515
    %517 = vrot.lane.b32.xlu0 %v117, 72
    %v518 = vpop.permute.xlu0 %517
    %v519 = vsel %vm127, %v516, 0
    %v521 = vsel %vm127, %v518, 0
    %523 = vmatpush.xpose.msra.mxu0 0.0
    %524 = vmatpush.xpose.msra.mxu0 0.0
    %525 = vmatpush.xpose.msra.mxu0 0.0
    %526 = vmatpush.xpose.msra.mxu0 0.0
    %527 = vmatpush.xpose.msra.mxu0 0.0
    %528 = vmatpush.xpose.msra.mxu0 0.0
    %529 = vmatpush.xpose.msra.mxu0 0.0
    %530 = vmatpush.xpose.msra.mxu0 0.0
    %531 = vmatpush.xpose.msra.mxu0 0.0
    %532 = vmatpush.xpose.msra.mxu0 0.0
    %533 = vmatpush.xpose.msra.mxu0 0.0
    %534 = vmatpush.xpose.msra.mxu0 0.0
    %535 = vmatpush.xpose.msra.mxu0 0.0
    %536 = vmatpush.xpose.msra.mxu0 0.0
    %537 = vmatpush.xpose.msra.mxu0 0.0
    %538 = vmatpush.xpose.msra.mxu0 %v521
    %539 = vmatmul.f32.gmra.mxu0 %v519
    %v540 = vpop.f32.mrf.mxu0
    %v541 = vadd.f32 %v82, %v540
    %542 = vdwg.mxu0
    %543 = vrot.lane.b32.xlu0 %v123, 104
    %v544 = vpop.permute.xlu0 %543
    %545 = vrot.lane.b32.xlu0 %v120, 72
    %v546 = vpop.permute.xlu0 %545
    %v547 = vsel %vm127, %v544, 0
    %v549 = vsel %vm127, %v546, 0
    %551 = vmatpush.xpose.msra.mxu0 0.0
    %552 = vmatpush.xpose.msra.mxu0 0.0
    %553 = vmatpush.xpose.msra.mxu0 0.0
    %554 = vmatpush.xpose.msra.mxu0 0.0
    %555 = vmatpush.xpose.msra.mxu0 0.0
    %556 = vmatpush.xpose.msra.mxu0 0.0
    %557 = vmatpush.xpose.msra.mxu0 0.0
    %558 = vmatpush.xpose.msra.mxu0 0.0
    %559 = vmatpush.xpose.msra.mxu0 0.0
    %560 = vmatpush.xpose.msra.mxu0 0.0
    %561 = vmatpush.xpose.msra.mxu0 0.0
    %562 = vmatpush.xpose.msra.mxu0 0.0
    %563 = vmatpush.xpose.msra.mxu0 0.0
    %564 = vmatpush.xpose.msra.mxu0 0.0
    %565 = vmatpush.xpose.msra.mxu0 0.0
    %566 = vmatpush.xpose.msra.mxu0 %v549
    %567 = vmatmul.f32.gmra.mxu0 %v547
    %v568 = vpop.f32.mrf.mxu0
    %v569 = vadd.f32 %v83, %v568
    %570 = vdwg.mxu0
    %v571 = vsel %vm127, %v541, -inf
    %572 = vmax.xlane.f32.xlu0 %v571
    %v573 = vpop.xlane.xlu0 %572
    %v574 = vsel %vm127, %v569, -inf
    %575 = vmax.xlane.f32.xlu0 %v574
    %v576 = vpop.xlane.xlu0 %575
    %v577 = vsub.f32 %v541, %v573
    %v578 = vsub.f32 %v569, %v576
    %v579 = vmul.f32 %v577, 1.442695
    %v580 = vpow.pop %v579
    %v581 = vmul.f32 %v578, 1.442695
    %v582 = vpow.pop %v581
    %v583 = vsel %vm127, %v580, 0.0
    %584 = vadd.xlane.f32.xlu0 %v583
    %v585 = vpop.xlane.xlu0 %584
    %v586 = vsel %vm127, %v582, 0.0
    %587 = vadd.xlane.f32.xlu0 %v586
    %v588 = vpop.xlane.xlu0 %587
    %v589 = vrcp.pop %v585
    %v590 = vrcp.pop %v588
    %v591 = vmul.f32 %v580, %v589
    %v592 = vmul.f32 %v582, %v590
    %593 = vrot.lane.b32.xlu0 %v117, 40
    %v594 = vpop.permute.xlu0 %593
    %v597 = vsel %vm127, %v591, 0
    %599 = vmatpush.msra.mxu0 0.0
    %600 = vmatpush.msra.mxu0 0.0
    %601 = vmatpush.msra.mxu0 0.0
    %602 = vmatpush.msra.mxu0 0.0
    %603 = vmatpush.msra.mxu0 0.0
    %604 = vmatpush.msra.mxu0 0.0
    %605 = vmatpush.msra.mxu0 0.0
    %606 = vmatpush.msra.mxu0 0.0
    %607 = vmatpush.msra.mxu0 0.0
    %608 = vmatpush.msra.mxu0 0.0
    %609 = vmatpush.msra.mxu0 0.0
    %610 = vmatpush.msra.mxu0 0.0
    %611 = vmatpush.msra.mxu0 0.0
    %612 = vmatpush.msra.mxu0 0.0
    %613 = vmatpush.msra.mxu0 0.0
    %614 = vmatpush.msra.mxu0 %v594
    %615 = vmatmul.f32.gmra.mxu0 %v597
    %v616 = vpop.f32.mrf.mxu0
    %v617 = vadd.f32 0.0, %v616
    %618 = vdwg.mxu0
    %619 = vrot.lane.b32.xlu0 %v120, 40
    %v620 = vpop.permute.xlu0 %619
    %v623 = vsel %vm127, %v592, 0
    %625 = vmatpush.msra.mxu0 0.0
    %626 = vmatpush.msra.mxu0 0.0
    %627 = vmatpush.msra.mxu0 0.0
    %628 = vmatpush.msra.mxu0 0.0
    %629 = vmatpush.msra.mxu0 0.0
    %630 = vmatpush.msra.mxu0 0.0
    %631 = vmatpush.msra.mxu0 0.0
    %632 = vmatpush.msra.mxu0 0.0
    %633 = vmatpush.msra.mxu0 0.0
    %634 = vmatpush.msra.mxu0 0.0
    %635 = vmatpush.msra.mxu0 0.0
    %636 = vmatpush.msra.mxu0 0.0
    %637 = vmatpush.msra.mxu0 0.0
    %638 = vmatpush.msra.mxu0 0.0
    %639 = vmatpush.msra.mxu0 0.0
    %640 = vmatpush.msra.mxu0 %v620
    %641 = vmatmul.f32.gmra.mxu0 %v623
    %v642 = vpop.f32.mrf.mxu0
    %v643 = vadd.f32 0.0, %v642
    %644 = vdwg.mxu0
    %647 = vrot.lane.b32.xlu0 %v357, 8
    %v648 = vpop.permute.xlu0 %647
    %649 = vrot.lane.b32.xlu0 %v383, 8
    %v650 = vpop.permute.xlu0 %649
    %655 = vrot.lane.b32.xlu0 %v487, 16
    %v656 = vpop.permute.xlu0 %655
    %657 = vrot.lane.b32.xlu0 %v513, 16
    %v658 = vpop.permute.xlu0 %657
    %663 = vrot.lane.b32.xlu0 %v617, 24
    %v664 = vpop.permute.xlu0 %663
    %665 = vrot.lane.b32.xlu0 %v643, 24
    %v666 = vpop.permute.xlu0 %665
    %v669 = vsel %vm127, %v227, %v648
    %v670 = vsel %vm127, %v253, %v650
    %vm671 = vcmask 130048
    %v672 = vsel %vm671, %v669, %v656
    %v673 = vsel %vm671, %v670, %v658
    %vm674 = vcmask 195584
    %v675 = vsel %vm674, %v672, %v664
    %v676 = vsel %vm674, %v673, %v666
    %v677 = vld [vmem:[%s4] sm:$0xff]
    %v678 = vld [vmem:[%s4 + $0x8] sm:$0xff]
    %v679 = vld [vmem:[%s4 + $0x10] sm:$0xff]
    %v680 = vld [vmem:[%s4 + $0x18] sm:$0xff]
    %v681 = vld [vmem:[%s5] sm:$0x1]
    %v683 = vperm.slane %v681, 0
    %v686 = vsel %vm92, %v675, 0
    %v689 = vsel %vm92, %v676, 0
    %691 = vmatpush.msra.mxu0 0.0
    %692 = vmatpush.msra.mxu0 0.0
    %693 = vmatpush.msra.mxu0 0.0
    %694 = vmatpush.msra.mxu0 0.0
    %695 = vmatpush.msra.mxu0 0.0
    %696 = vmatpush.msra.mxu0 0.0
    %697 = vmatpush.msra.mxu0 0.0
    %698 = vmatpush.msra.mxu0 0.0
    %699 = vmatpush.msra.mxu0 0.0
    %700 = vmatpush.msra.mxu0 0.0
    %701 = vmatpush.msra.mxu0 0.0
    %702 = vmatpush.msra.mxu0 0.0
    %703 = vmatpush.msra.mxu0 %v680
    %704 = vmatpush.msra.mxu0 %v679
    %705 = vmatpush.msra.mxu0 %v678
    %706 = vmatpush.msra.mxu0 %v677
    %707 = vmatmul.f32.gmra.mxu0 %v686
    %v708 = vpop.f32.mrf.mxu0
    %v709 = vadd.f32 %v683, %v708
    %710 = vmatmul.f32.gmra.mxu0 %v689
    %v711 = vpop.f32.mrf.mxu0
    %v712 = vadd.f32 %v683, %v711
    %713 = vdwg.mxu0
    %v714 = vadd.f32 %v80, %v709
    %v715 = vadd.f32 %v81, %v712
    %v716 = vld [vmem:[%s6] sm:$0x1]
    %v717 = vld [vmem:[%s7] sm:$0x1]
    %v718 = vsel %vm92, %v714, 0.0
    %719 = vadd.xlane.f32.xlu0 %v718
    %v720 = vpop.xlane.xlu0 %719
    %v721 = vsel %vm92, %v715, 0.0
    %722 = vadd.xlane.f32.xlu0 %v721
    %v723 = vpop.xlane.xlu0 %722
    %v724 = vrcp.pop 32.0
    %v725 = vmul.f32 32.0, %v724
    %v726 = vsub.f32 1.0, %v725
    %v727 = vmul.f32 %v724, %v726
    %v728 = vadd.f32 %v724, %v727
    %vm729 = vweird.f32 %v724
    %v730 = vsel %vm729, %v724, %v728
    %v731 = vmul.f32 %v720, %v730
    %v732 = vmul.f32 %v723, %v730
    %v733 = vsub.f32 %v714, %v731
    %v734 = vsub.f32 %v715, %v732
    %v735 = vmul.f32 %v733, %v733
    %v736 = vmul.f32 %v734, %v734
    %v737 = vsel %vm92, %v735, 0.0
    %738 = vadd.xlane.f32.xlu0 %v737
    %v739 = vpop.xlane.xlu0 %738
    %v740 = vsel %vm92, %v736, 0.0
    %741 = vadd.xlane.f32.xlu0 %v740
    %v742 = vpop.xlane.xlu0 %741
    %v743 = vmul.f32 %v739, %v730
    %v744 = vmul.f32 %v742, %v730
    %v745 = vadd.f32 %v743, 1e-06
    %v746 = vadd.f32 %v744, 1e-06
    %v747 = vrsqrt.pop %v745
    %v748 = vmul.f32 %v747, %v745
    %v749 = vmul.f32 %v748, %v747
    %v750 = vmul.f32 0.5, %v749
    %v751 = vsub.f32 1.5, %v750
    %v752 = vmul.f32 %v747, %v751
    %vm753 = vweird.f32 %v745
    %vm754 = vweird.f32 %v747
    %vm755 = vmor %vm753, %vm754
    %v756 = vsel %vm755, %v747, %v752
    %v757 = vrsqrt.pop %v746
    %v758 = vmul.f32 %v757, %v746
    %v759 = vmul.f32 %v758, %v757
    %v760 = vmul.f32 0.5, %v759
    %v761 = vsub.f32 1.5, %v760
    %v762 = vmul.f32 %v757, %v761
    %vm763 = vweird.f32 %v746
    %vm764 = vweird.f32 %v757
    %vm765 = vmor %vm763, %vm764
    %v766 = vsel %vm765, %v757, %v762
    %v767 = vmul.f32 %v733, %v756
    %v768 = vmul.f32 %v734, %v766
    %v770 = vperm.slane %v716, 0
    %v772 = vmul.f32 %v767, %v770
    %v773 = vmul.f32 %v768, %v770
    %v775 = vperm.slane %v717, 0
    %v777 = vadd.f32 %v772, %v775
    %v778 = vadd.f32 %v773, %v775
    %v779 = vld [vmem:[%s8] sm:$0xff]
    %v780 = vld [vmem:[%s8 + $0x8] sm:$0xff]
    %v781 = vld [vmem:[%s8 + $0x10] sm:$0xff]
    %v782 = vld [vmem:[%s8 + $0x18] sm:$0xff]
    %v783 = vld [vmem:[%s9] sm:$0x1]
    %v785 = vperm.slane %v783, 0
    %v788 = vsel %vm92, %v777, 0
    %v791 = vsel %vm92, %v778, 0
    %793 = vmatpush.msra.mxu0 0.0
    %794 = vmatpush.msra.mxu0 0.0
    %795 = vmatpush.msra.mxu0 0.0
    %796 = vmatpush.msra.mxu0 0.0
    %797 = vmatpush.msra.mxu0 0.0
    %798 = vmatpush.msra.mxu0 0.0
    %799 = vmatpush.msra.mxu0 0.0
    %800 = vmatpush.msra.mxu0 0.0
    %801 = vmatpush.msra.mxu0 0.0
    %802 = vmatpush.msra.mxu0 0.0
    %803 = vmatpush.msra.mxu0 0.0
    %804 = vmatpush.msra.mxu0 0.0
    %805 = vmatpush.msra.mxu0 %v782
    %806 = vmatpush.msra.mxu0 %v781
    %807 = vmatpush.msra.mxu0 %v780
    %808 = vmatpush.msra.mxu0 %v779
    %809 = vmatmul.f32.gmra.mxu0 %v788
    %v810 = vpop.f32.mrf.mxu0
    %v811 = vadd.f32 %v785, %v810
    %812 = vmatmul.f32.gmra.mxu0 %v791
    %v813 = vpop.f32.mrf.mxu0
    %v814 = vadd.f32 %v785, %v813
    %815 = vdwg.mxu0
    %v816 = vmul.f32 %v811, 0.5
    %v817 = vmul.f32 %v814, 0.5
    %v818 = vmul.f32 %v811, 0.70710677
    %v819 = vmul.f32 %v814, 0.70710677
    %v820 = vmul.f32 %v818, %v818
    %v821 = vmin.f32 16.0, %v820
    %v822 = vmul.f32 %v821, 2.1237322e-06
    %v823 = vadd.f32 %v822, 0.00028619796
    %v824 = vmul.f32 %v821, %v823
    %v825 = vadd.f32 %v824, 0.0036580483
    %v826 = vmul.f32 %v821, %v825
    %v827 = vadd.f32 %v826, 0.05243302
    %v828 = vmul.f32 %v821, %v827
    %v829 = vadd.f32 %v828, 0.18741608
    %v830 = vmul.f32 %v821, %v829
    %v831 = vadd.f32 %v830, 1.1283791
    %v832 = vmul.f32 %v818, %v831
    %v833 = vmul.f32 %v821, 3.8918573e-05
    %v834 = vadd.f32 %v833, 0.001143296
    %v835 = vmul.f32 %v821, %v834
    %v836 = vadd.f32 %v835, 0.014752088
    %v837 = vmul.f32 %v821, %v836
    %v838 = vadd.f32 %v837, 0.112945676
    %v839 = vmul.f32 %v821, %v838
    %v840 = vadd.f32 %v839, 0.4994258
    %v841 = vmul.f32 %v821, %v840
    %v842 = vadd.f32 %v841, 1.0
    %v843 = vrcp.pop %v842
    %v844 = vmul.f32 %v842, %v843
    %v845 = vsub.f32 1.0, %v844
    %v846 = vmul.f32 %v843, %v845
    %v847 = vadd.f32 %v843, %v846
    %vm848 = vweird.f32 %v842
    %vm849 = vweird.f32 %v843
    %vm850 = vmor %vm848, %vm849
    %v851 = vsel %vm850, %v843, %v847
    %v852 = vand.u32 2147483647, %v842
    %vm853 = vcmp.eq.f32.partialorder %v852, 8.507059e+37
    %v854 = vand.u32 %v842, 2147483648
    %v855 = vor.u32 1.1754944e-38, %v854
    %v856 = vsel %vm853, %v855, %v851
    %v857 = vmul.f32 %v832, %v856
    %v858 = vmin.f32 %v857, 1.0
    %v859 = vmax.f32 %v858, -1.0
    %v860 = vmul.f32 %v819, %v819
    %v861 = vmin.f32 16.0, %v860
    %v862 = vmul.f32 %v861, 2.1237322e-06
    %v863 = vadd.f32 %v862, 0.00028619796
    %v864 = vmul.f32 %v861, %v863
    %v865 = vadd.f32 %v864, 0.0036580483
    %v866 = vmul.f32 %v861, %v865
    %v867 = vadd.f32 %v866, 0.05243302
    %v868 = vmul.f32 %v861, %v867
    %v869 = vadd.f32 %v868, 0.18741608
    %v870 = vmul.f32 %v861, %v869
    %v871 = vadd.f32 %v870, 1.1283791
    %v872 = vmul.f32 %v819, %v871
    %v873 = vmul.f32 %v861, 3.8918573e-05
    %v874 = vadd.f32 %v873, 0.001143296
    %v875 = vmul.f32 %v861, %v874
    %v876 = vadd.f32 %v875, 0.014752088
    %v877 = vmul.f32 %v861, %v876
    %v878 = vadd.f32 %v877, 0.112945676
    %v879 = vmul.f32 %v861, %v878
    %v880 = vadd.f32 %v879, 0.4994258
    %v881 = vmul.f32 %v861, %v880
    %v882 = vadd.f32 %v881, 1.0
    %v883 = vrcp.pop %v882
    %v884 = vmul.f32 %v882, %v883
    %v885 = vsub.f32 1.0, %v884
    %v886 = vmul.f32 %v883, %v885
    %v887 = vadd.f32 %v883, %v886
    %vm888 = vweird.f32 %v882
    %vm889 = vweird.f32 %v883
    %vm890 = vmor %vm888, %vm889
    %v891 = vsel %vm890, %v883, %v887
    %v892 = vand.u32 2147483647, %v882
    %vm893 = vcmp.eq.f32.partialorder %v892, 8.507059e+37
    %v894 = vand.u32 %v882, 2147483648
    %v895 = vor.u32 1.1754944e-38, %v894
    %v896 = vsel %vm893, %v895, %v891
    %v897 = vmul.f32 %v872, %v896
    %v898 = vmin.f32 %v897, 1.0
    %v899 = vmax.f32 %v898, -1.0
    %v900 = vadd.f32 %v859, 1.0
    %v901 = vadd.f32 %v899, 1.0
    %v902 = vmul.f32 %v816, %v900
    %v903 = vmul.f32 %v817, %v901
    %v904 = vld [vmem:[%s10] sm:$0xff]
    %v905 = vld [vmem:[%s10 + $0x8] sm:$0xff]
    %v906 = vld [vmem:[%s10 + $0x10] sm:$0xff]
    %v907 = vld [vmem:[%s10 + $0x18] sm:$0xff]
    %v908 = vld [vmem:[%s10 + $0x20] sm:$0xff]
    %v909 = vld [vmem:[%s10 + $0x28] sm:$0xff]
    %v910 = vld [vmem:[%s10 + $0x30] sm:$0xff]
    %v911 = vld [vmem:[%s10 + $0x38] sm:$0xff]
    %v912 = vld [vmem:[%s11] sm:$0x1]
    %v914 = vperm.slane %v912, 0
    %vm916 = vcmask 523264
    %v918 = vsel %vm916, %v902, 0
    %v921 = vsel %vm916, %v903, 0
    %923 = vmatpush.msra.mxu0 0.0
    %924 = vmatpush.msra.mxu0 0.0
    %925 = vmatpush.msra.mxu0 0.0
    %926 = vmatpush.msra.mxu0 0.0
    %927 = vmatpush.msra.mxu0 0.0
    %928 = vmatpush.msra.mxu0 0.0
    %929 = vmatpush.msra.mxu0 0.0
    %930 = vmatpush.msra.mxu0 0.0
    %931 = vmatpush.msra.mxu0 %v911
    %932 = vmatpush.msra.mxu0 %v910
    %933 = vmatpush.msra.mxu0 %v909
    %934 = vmatpush.msra.mxu0 %v908
    %935 = vmatpush.msra.mxu0 %v907
    %936 = vmatpush.msra.mxu0 %v906
    %937 = vmatpush.msra.mxu0 %v905
    %938 = vmatpush.msra.mxu0 %v904
    %939 = vmatmul.f32.gmra.mxu0 %v918
    %v940 = vpop.f32.mrf.mxu0
    %v941 = vadd.f32 %v914, %v940
    %942 = vmatmul.f32.gmra.mxu0 %v921
    %v943 = vpop.f32.mrf.mxu0
    %v944 = vadd.f32 %v914, %v943
    %945 = vdwg.mxu0
    %v946 = vadd.f32 %v941, %v777
    %v947 = vadd.f32 %v944, %v778
    %v948 = vadd.f32 %v946, %v80
    %v949 = vadd.f32 %v947, %v81
    %v950 = vld [vmem:[%s12] sm:$0x1]
    %v951 = vld [vmem:[%s13] sm:$0x1]
    %v952 = vsel %vm92, %v948, 0.0
    %953 = vadd.xlane.f32.xlu0 %v952
    %v954 = vpop.xlane.xlu0 %953
    %v955 = vsel %vm92, %v949, 0.0
    %956 = vadd.xlane.f32.xlu0 %v955
    %v957 = vpop.xlane.xlu0 %956
    %v958 = vmul.f32 %v954, %v730
    %v959 = vmul.f32 %v957, %v730
    %v960 = vsub.f32 %v948, %v958
    %v961 = vsub.f32 %v949, %v959
    %v962 = vmul.f32 %v960, %v960
    %v963 = vmul.f32 %v961, %v961
    %v964 = vsel %vm92, %v962, 0.0
    %965 = vadd.xlane.f32.xlu0 %v964
    %v966 = vpop.xlane.xlu0 %965
    %v967 = vsel %vm92, %v963, 0.0
    %968 = vadd.xlane.f32.xlu0 %v967
    %v969 = vpop.xlane.xlu0 %968
    %v970 = vmul.f32 %v966, %v730
    %v971 = vmul.f32 %v969, %v730
    %v972 = vadd.f32 %v970, 1e-06
    %v973 = vadd.f32 %v971, 1e-06
    %v974 = vrsqrt.pop %v972
    %v975 = vmul.f32 %v974, %v972
    %v976 = vmul.f32 %v975, %v974
    %v977 = vmul.f32 0.5, %v976
    %v978 = vsub.f32 1.5, %v977
    %v979 = vmul.f32 %v974, %v978
    %vm980 = vweird.f32 %v972
    %vm981 = vweird.f32 %v974
    %vm982 = vmor %vm980, %vm981
    %v983 = vsel %vm982, %v974, %v979
    %v984 = vrsqrt.pop %v973
    %v985 = vmul.f32 %v984, %v973
    %v986 = vmul.f32 %v985, %v984
    %v987 = vmul.f32 0.5, %v986
    %v988 = vsub.f32 1.5, %v987
    %v989 = vmul.f32 %v984, %v988
    %vm990 = vweird.f32 %v973
    %vm991 = vweird.f32 %v984
    %vm992 = vmor %vm990, %vm991
    %v993 = vsel %vm992, %v984, %v989
    %v994 = vmul.f32 %v960, %v983
    %v995 = vmul.f32 %v961, %v993
    %v997 = vperm.slane %v950, 0
    %v999 = vmul.f32 %v994, %v997
    %v1000 = vmul.f32 %v995, %v997
    %v1002 = vperm.slane %v951, 0
    %v1004 = vadd.f32 %v999, %v1002
    %v1005 = vadd.f32 %v1000, %v1002
    %1006 = vst.msk [vmem:[#allocation7] sm:$0xff] %vm92, %v1004
    %1007 = vst.msk [vmem:[#allocation7 + $0x8] sm:$0xff] %vm92, %v1005
    // Predicated region
    $region66: #{tpu_custom_call.1} parent=1 // pred_check
      _
    $region67: #{tpu_custom_call.1} parent=1 // pred_check_branch
      %1009 = sbr.rel (0) target = $region69
    $region68: #{tpu_custom_call.1} parent=1 // pred_region
      %1011 = vsyncadd [#allocation4], 0
      %s1012 = sshll.u32 [#allocation7], 4
      %s1013 = int_to_ptr.vmem [resolvable:$true] %s1012
      %s1014 = sshll.u32 %s14, 4
      %s1015 = int_to_ptr.hbm [resolvable:$true] %s1014
      %1020 = dma.vmem_to_hbm [thread:$0]  %s1013, 256, %s1015, [#allocation4], 128, 128, 8
    $region69: #{tpu_custom_call.1} parent=1 // pred_fallthru
      _
    // Predicated region
    $region70: #{tpu_custom_call.1} parent=1 // pred_check
      _
    $region71: #{tpu_custom_call.1} parent=1 // pred_check_branch
      %1022 = sbr.rel (0) target = $region73
    $region72: #{tpu_custom_call.1} parent=1 // pred_region
      %1024 = dma.done [#allocation4], 256
    $region73: #{tpu_custom_call.1} parent=1 // pred_fallthru
      _
    %1025 = vsyncpa [#allocation3], 1
    %1026 = vsyncpa [#allocation6], 1
    %1027 = vsyncpa [#allocation4], 1

</llo_original>
